<compile_context>
chip_gen: v7x
topology: tpu7x:2x2x1
jax: 0.10.0
libtpu: 0.0.40
codegen_flags: <defaults>
</compile_context>

<pallas_src>
import jax
import jax.numpy as jnp
from jax import lax
from jax.experimental import pallas as pl
from jax.experimental.pallas import tpu as pltpu

PAD = 0  # constants.PAD


def _round_up(x, m):
    return (x + m - 1) // m * m


def _sigmoid(x):
    # exact identity sigmoid(x) = 0.5*tanh(0.5*x) + 0.5 : one EUP op, no divide.
    return 0.5 * jnp.tanh(0.5 * x) + 0.5


def gru_similarity_kernel(x_ref, w_ih_ref, w_hh_ref, gi_b_ref, b_hn_ref,
                          wh_f_ref, wh_b_ref, wp_w_ref, wp_b_ref,
                          pred_ref, gi_ref):
    # x_ref: (T, 2, bt, E) bf16 -- time-major; side 0 = left sentences, 1 = right.
    T, two, bt, E = x_ref.shape
    N = two * bt                         # stacked left+right recurrence batch
    Mp = b_hn_ref.shape[1]               # padded memory size (multiple of 128)
    M3 = 3 * Mp

    w_ih = w_ih_ref[...]                 # (E, 3Mp)  bf16, gate order r,z,n
    w_hh = w_hh_ref[...]                 # (Mp, 3Mp) bf16
    b_hn = b_hn_ref[...]                 # (1, Mp)   f32 (n-gate hidden bias)

    # ---- input projection hoisted out of the recurrence: ONE MXU matmul.
    # b_ih and the r/z halves of b_hh are pre-folded into gi_b, so the serial loop
    # only adds the n-gate hidden bias.
    x_flat = x_ref[...].reshape(T * N, E)                              # bf16
    gi_all = (jnp.dot(x_flat, w_ih, preferred_element_type=jnp.float32)
              + gi_b_ref[...])                                         # (T*N, 3Mp) f32
    # Stage in a bf16 VMEM scratch to bound live ranges / halve footprint.
    gi_ref[...] = gi_all.reshape(T, N, M3).astype(jnp.bfloat16)

    # ---- fused left+right recurrence; only h @ W_hh stays on the serial chain.
    def step(t, h):
        gi = gi_ref[t].astype(jnp.float32)                             # (N, 3Mp)
        # NOTE: h is re-quantized to bf16 per step for the MXU; switch to an f32
        # matmul if accuracy tests against the f32 PyTorch reference demand it.
        gh = jnp.dot(h.astype(jnp.bfloat16), w_hh,
                     preferred_element_type=jnp.float32)               # (N, 3Mp)
        rz = _sigmoid(gi[:, :2 * Mp] + gh[:, :2 * Mp])  # one EUP pass for r and z
        r = rz[:, :Mp]
        z = rz[:, Mp:]
        n = jnp.tanh(gi[:, 2 * Mp:] + r * (gh[:, 2 * Mp:] + b_hn))
        return n + z * (h - n)           # == (1 - z) * n + z * h

    h0 = jnp.zeros((N, Mp), jnp.float32)
    h = lax.fori_loop(0, T, step, h0, unroll=True if T <= 16 else 2)

    lh = h[:bt]                          # (bt, Mp) final GRU state, left
    rh = h[bt:]                          # (bt, Mp) final GRU state, right

    # TODO(synk): the reference forward passes the full (B, T, M) `lstate` into
    # Similarity, which is shape-inconsistent with its Linear(2*mem_dim=4*M, H); we
    # honor the declared weight shapes by using [final_output || final_hidden]
    # (identical for a unidirectional GRU), i.e. lvec = [lh, lh], rvec = [rh, rh].
    # That duplication is pre-folded into wh_fold, so no lane concatenations here.
    m = lh * rh                          # torch.mul(lvec, rvec)   (dedup'd)
    a = jnp.abs(lh - rh)                 # torch.abs(lvec - rvec)  (dedup'd)

    wh_f = wh_f_ref[...]                 # (2Mp, Hp) bf16: [W_mul ; W_abs]
    hid = _sigmoid(
        jnp.dot(m.astype(jnp.bfloat16), wh_f[:Mp],
                preferred_element_type=jnp.float32)
        + jnp.dot(a.astype(jnp.bfloat16), wh_f[Mp:],
                  preferred_element_type=jnp.float32)
        + wh_b_ref[...])                 # (bt, Hp)

    # Final Linear(H, 1): broadcast multiply + lane reduce instead of a 1-lane MXU op.
    pred = _sigmoid(jnp.sum(hid * wp_w_ref[...], axis=-1, keepdims=True)
                    + wp_b_ref[...])
    pred_ref[...] = pred                 # (bt, 1)


def _choose_bt(B, T, E, M3, budget_bytes):
    """Largest pair-batch tile (full B or a multiple of 8, capped at 256) that fits."""
    def need(bt):
        n = 2 * bt
        return (2 * T * n * E * 2       # double-buffered bf16 x block
                + T * n * M3 * 2        # bf16 gi scratch
                + 6 * n * M3 * 4)       # h / gh / gate temps (f32), rough
    bt = min(B, 256)
    if need(bt) > budget_bytes:
        bt = 8
        while bt * 2 <= min(B, 256) and need(bt * 2) <= budget_bytes:
            bt *= 2
        bt = min(bt, B)
    # Keep >=2 grid steps for 2-TC chips (v7x) once each half still fills the MXU
    # (>=128 recurrence rows per block).
    if bt >= B and B >= 128:
        bt = max(8, _round_up((B + 1) // 2, 8))
    return bt


def similarity_gru_forward(linputs, rinputs, params):
    """linputs, rinputs: int32 token ids of shape (B, T)."""
    emb = params["embedding"]                                # (V, E) bf16, PAD row zeroed
    # TODO(synk): fuse the embedding gather into the kernel (scalar-prefetched ids +
    # per-row DMA from an HBM-resident table) to avoid materializing (T,2,B,E) in HBM.
    lx = jnp.take(emb, linputs, axis=0)                      # (B, T, E) bf16
    rx = jnp.take(emb, rinputs, axis=0)                      # (B, T, E) bf16
    B, T, E = lx.shape

    # Time-major layout so the hoisted projection writes the scratch in (T, N, 3M)
    # row order and each recurrence step reads a leading-axis slice.
    x = jnp.transpose(jnp.stack([lx, rx], axis=0), (2, 0, 1, 3))  # (T, 2, B, E) bf16

    Mp = params["b_hn"].shape[1]
    M3 = 3 * Mp

    # Per-generation VMEM budget (v7x: 64 MiB, v5e/v6e: 128 MiB); raise the scoped
    # limit explicitly (v5e default is only 16 MiB).
    try:
        cap = int(pltpu.get_tpu_info().vmem_capacity_bytes)
    except Exception:
        cap = 64 << 20
    vmem_limit = max(32 << 20, min(cap - (16 << 20), 112 << 20))
    budget = int(vmem_limit * 0.7)       # leave headroom for weights + compiler scratch

    bt = _choose_bt(B, T, E, M3, budget)
    grid = (pl.cdiv(B, bt),)

    def full_spec(arr):
        # TODO(synk): single-buffer these constant-index weights
        # (pipeline_mode=pl.Buffered(1)) to reclaim VMEM under v7x's 64 MiB ceiling.
        nd = arr.ndim
        return pl.BlockSpec(arr.shape, lambda i, _nd=nd: (0,) * _nd)

    grid_spec = pltpu.PrefetchScalarGridSpec(
        num_scalar_prefetch=0,
        grid=grid,
        in_specs=[
            pl.BlockSpec((T, 2, bt, E), lambda i: (0, 0, i, 0)),
            full_spec(params["w_ih_t"]),
            full_spec(params["w_hh_t"]),
            full_spec(params["gi_bias"]),
            full_spec(params["b_hn"]),
            full_spec(params["wh_fold"]),
            full_spec(params["wh_b"]),
            full_spec(params["wp_w"]),
            full_spec(params["wp_b"]),
        ],
        out_specs=pl.BlockSpec((bt, 1), lambda i: (i, 0)),
        scratch_shapes=[pltpu.VMEM((T, 2 * bt, M3), jnp.bfloat16)],
    )
    return pl.pallas_call(
        gru_similarity_kernel,
        out_shape=jax.ShapeDtypeStruct((B, 1), jnp.float32),
        grid_spec=grid_spec,
        compiler_params=pltpu.CompilerParams(
            dimension_semantics=("parallel",),
            vmem_limit_bytes=vmem_limit),
    )(x,
      params["w_ih_t"], params["w_hh_t"], params["gi_bias"], params["b_hn"],
      params["wh_fold"], params["wh_b"], params["wp_w"], params["wp_b"])


def init_params(key, vocab_size, embedding_dim, memory_size, hidden_size):
    E, M, H = embedding_dim, memory_size, hidden_size
    Mp, Hp = _round_up(M, 128), _round_up(H, 128)   # lane-align gate/head slices
    ks = jax.random.split(key, 9)
    emb = jax.random.normal(ks[0], (vocab_size, E), jnp.float32) * 0.1
    emb = emb.at[PAD].set(0.0)                               # padding_idx behavior
    w_ih = jax.random.normal(ks[1], (3 * M, E), jnp.float32) * 0.1   # gates r,z,n
    w_hh = jax.random.normal(ks[2], (3 * M, M), jnp.float32) * 0.1
    b_ih = jax.random.normal(ks[3], (3 * M,), jnp.float32) * 0.1
    b_hh = jax.random.normal(ks[4], (3 * M,), jnp.float32) * 0.1
    # Similarity(mem_dim=2*M, hid_dim=H): wh = Linear(4*M, H), wp = Linear(H, 1)
    wh_w = jax.random.normal(ks[5], (H, 4 * M), jnp.float32) * 0.1
    wh_b = jax.random.normal(ks[6], (H,), jnp.float32) * 0.1
    wp_w = jax.random.normal(ks[7], (1, H), jnp.float32) * 0.1
    wp_b = jax.random.normal(ks[8], (1,), jnp.float32) * 0.1

    # Zero-pad each gate's block from M to Mp so all gate slices are 128-aligned.
    def pad_gate_cols(w_t):   # (in, 3M) -> (in, 3Mp)
        parts = [jnp.pad(w_t[:, g * M:(g + 1) * M], ((0, 0), (0, Mp - M)))
                 for g in range(3)]
        return jnp.concatenate(parts, axis=1)

    def pad_gate_vec(b):      # (3M,) -> (3Mp,)
        parts = [jnp.pad(b[g * M:(g + 1) * M], (0, Mp - M)) for g in range(3)]
        return jnp.concatenate(parts)

    w_ih_t = pad_gate_cols(w_ih.T)                                   # (E, 3Mp)
    w_hh_t = jnp.pad(pad_gate_cols(w_hh.T), ((0, Mp - M), (0, 0)))   # (Mp, 3Mp)

    b_ih_p = pad_gate_vec(b_ih)
    b_hh_p = pad_gate_vec(b_hh)
    # Fold r/z halves of b_hh into the hoisted-projection bias; keep only b_hn in-loop.
    gi_bias = b_ih_p.at[:2 * Mp].add(b_hh_p[:2 * Mp])                # (3Mp,)
    b_hn = b_hh_p[2 * Mp:]                                           # (Mp,)

    # Fold the lvec = [h, h] duplication into the head weight:
    # vec = [m, m, a, a]  =>  vec @ wh_w.T = m @ (W0 + W1) + a @ (W2 + W3)
    wh_t = wh_w.T                                                    # (4M, H)
    w_mul = wh_t[:M] + wh_t[M:2 * M]
    w_abs = wh_t[2 * M:3 * M] + wh_t[3 * M:]
    padmh = lambda a: jnp.pad(a, ((0, Mp - M), (0, Hp - H)))
    wh_fold = jnp.concatenate([padmh(w_mul), padmh(w_abs)], axis=0)  # (2Mp, Hp)

    return {
        "embedding": emb.astype(jnp.bfloat16),       # bf16: halves gather + DMA bytes
        "w_ih_t": w_ih_t.astype(jnp.bfloat16),       # (E, 3Mp)  MXU operand
        "w_hh_t": w_hh_t.astype(jnp.bfloat16),       # (Mp, 3Mp) MXU operand
        "gi_bias": gi_bias.reshape(1, 3 * Mp),       # f32 (post-accum add)
        "b_hn": b_hn.reshape(1, Mp),                 # f32
        "wh_fold": wh_fold.astype(jnp.bfloat16),     # (2Mp, Hp)
        "wh_b": jnp.pad(wh_b, (0, Hp - H)).reshape(1, Hp),
        "wp_w": jnp.pad(wp_w, ((0, 0), (0, Hp - H))),  # (1, Hp) f32 row for VPU reduce
        "wp_b": wp_b.reshape(1, 1),
    }


if __name__ == "__main__":
    VOCAB, E, M, H = 20, 16, 32, 24
    B, T = 2, 8

    key = jax.random.PRNGKey(0)
    k_par, k_l, k_r = jax.random.split(key, 3)
    params = init_params(k_par, VOCAB, E, M, H)

    linputs = jax.random.randint(k_l, (B, T), 0, VOCAB, dtype=jnp.int32)
    rinputs = jax.random.randint(k_r, (B, T), 0, VOCAB, dtype=jnp.int32)

    pred = similarity_gru_forward(linputs, rinputs, params)
    jax.block_until_ready(pred)
    assert pred.shape == (B, 1) and pred.dtype == jnp.float32
    assert bool(jnp.all(jnp.isfinite(pred)))
    print("KERNEL_OK")
</pallas_src>

<mosaic_0001>
module attributes {stable_mosaic.version = 11 : i64} {
  func.func @gru_similarity_kernel(%arg0: i32, %arg1: memref<8x2x2x16xbf16, #tpu.memory_space<vmem>>, %arg2: memref<16x384xbf16, #tpu.memory_space<vmem>>, %arg3: memref<128x384xbf16, #tpu.memory_space<vmem>>, %arg4: memref<1x384xf32, #tpu.memory_space<vmem>>, %arg5: memref<1x128xf32, #tpu.memory_space<vmem>>, %arg6: memref<256x128xbf16, #tpu.memory_space<vmem>>, %arg7: memref<1x128xf32, #tpu.memory_space<vmem>>, %arg8: memref<1x128xf32, #tpu.memory_space<vmem>>, %arg9: memref<1x1xf32, #tpu.memory_space<vmem>>, %arg10: memref<2x1xf32, #tpu.memory_space<vmem>>, %arg11: memref<8x4x384xbf16, #tpu.memory_space<vmem>>) attributes {dimension_semantics = [#tpu.dimension_semantics<parallel>], iteration_bounds = array<i64: 1>, scalar_prefetch = 0 : i64, scratch_operands = 1 : i64, tpu.core_type = #tpu.core_type<tc>, window_params = [{transform_indices = @transform_0, window_bounds = array<i64: 8, 2, 2, 16>}, {pipeline_mode = #tpu.pipeline_mode<synchronous>, transform_indices = @transform_1, window_bounds = array<i64: 16, 384>}, {pipeline_mode = #tpu.pipeline_mode<synchronous>, transform_indices = @transform_2, window_bounds = array<i64: 128, 384>}, {pipeline_mode = #tpu.pipeline_mode<synchronous>, transform_indices = @transform_3, window_bounds = array<i64: 1, 384>}, {pipeline_mode = #tpu.pipeline_mode<synchronous>, transform_indices = @transform_4, window_bounds = array<i64: 1, 128>}, {pipeline_mode = #tpu.pipeline_mode<synchronous>, transform_indices = @transform_5, window_bounds = array<i64: 256, 128>}, {pipeline_mode = #tpu.pipeline_mode<synchronous>, transform_indices = @transform_6, window_bounds = array<i64: 1, 128>}, {pipeline_mode = #tpu.pipeline_mode<synchronous>, transform_indices = @transform_7, window_bounds = array<i64: 1, 128>}, {pipeline_mode = #tpu.pipeline_mode<synchronous>, transform_indices = @transform_8, window_bounds = array<i64: 1, 1>}, {transform_indices = @transform_9, window_bounds = array<i64: 2, 1>}]} {
    %c0 = arith.constant 0 : index
    %c0_0 = arith.constant 0 : index
    %0 = vector.load %arg2[%c0, %c0_0] : memref<16x384xbf16, #tpu.memory_space<vmem>>, vector<16x384xbf16>
    %c0_1 = arith.constant 0 : index
    %c0_2 = arith.constant 0 : index
    %1 = vector.load %arg3[%c0_1, %c0_2] : memref<128x384xbf16, #tpu.memory_space<vmem>>, vector<128x384xbf16>
    %c0_3 = arith.constant 0 : index
    %c0_4 = arith.constant 0 : index
    %2 = vector.load %arg5[%c0_3, %c0_4] : memref<1x128xf32, #tpu.memory_space<vmem>>, vector<1x128xf32>
    %c0_5 = arith.constant 0 : index
    %c0_6 = arith.constant 0 : index
    %c0_7 = arith.constant 0 : index
    %c0_8 = arith.constant 0 : index
    %3 = vector.load %arg1[%c0_5, %c0_6, %c0_7, %c0_8] : memref<8x2x2x16xbf16, #tpu.memory_space<vmem>>, vector<8x2x2x16xbf16>
    %4 = vector.shape_cast %3 : vector<8x2x2x16xbf16> to vector<32x16xbf16>
    %cst = arith.constant dense<0.000000e+00> : vector<32x384xf32>
    %5 = tpu.matmul %4, %0, %cst {dimension_numbers = #tpu.dot_dimension_numbers<[1], [0], [0], [1], [0, 0, 1, 1], [], []>} : vector<32x16xbf16>, vector<16x384xbf16>, vector<32x384xf32> -> vector<32x384xf32>
    %c0_9 = arith.constant 0 : index
    %c0_10 = arith.constant 0 : index
    %6 = vector.load %arg4[%c0_9, %c0_10] : memref<1x384xf32, #tpu.memory_space<vmem>>, vector<1x384xf32>
    %7 = vector.broadcast %6 : vector<1x384xf32> to vector<32x384xf32>
    %8 = arith.addf %5, %7 : vector<32x384xf32>
    %9 = vector.shape_cast %8 : vector<32x384xf32> to vector<8x4x384xf32>
    %10 = arith.truncf %9 : vector<8x4x384xf32> to vector<8x4x384xbf16>
    %c0_11 = arith.constant 0 : index
    %c0_12 = arith.constant 0 : index
    %c0_13 = arith.constant 0 : index
    %11 = vector.load %arg11[%c0_11, %c0_12, %c0_13] : memref<8x4x384xbf16, #tpu.memory_space<vmem>>, vector<8x4x384xbf16>
    tpu.vector_store %arg11[%c0_11, %c0_12, %c0_13], %10 {strides = array<i32>} : memref<8x4x384xbf16, #tpu.memory_space<vmem>>, vector<8x4x384xbf16>,
    %cst_14 = arith.constant 0.000000e+00 : f32
    %12 = vector.broadcast %cst_14 : f32 to vector<4x128xf32>
    %c0_i32 = arith.constant 0 : i32
    %13 = arith.index_cast %c0_i32 : i32 to index
    %c0_15 = arith.constant 0 : index
    %c0_16 = arith.constant 0 : index
    %14 = vector.load %arg11[%13, %c0_15, %c0_16] : memref<8x4x384xbf16, #tpu.memory_space<vmem>>, vector<1x4x384xbf16>
    %15 = vector.shape_cast %14 : vector<1x4x384xbf16> to vector<4x384xbf16>
    %16 = arith.extf %15 : vector<4x384xbf16> to vector<4x384xf32>
    %17 = arith.truncf %12 : vector<4x128xf32> to vector<4x128xbf16>
    %cst_17 = arith.constant dense<0.000000e+00> : vector<4x384xf32>
    %18 = tpu.matmul %17, %1, %cst_17 {dimension_numbers = #tpu.dot_dimension_numbers<[1], [0], [0], [1], [0, 0, 1, 1], [], []>} : vector<4x128xbf16>, vector<128x384xbf16>, vector<4x384xf32> -> vector<4x384xf32>
    %19 = vector.extract_strided_slice %16 {offsets = [0, 0], sizes = [4, 256], strides = [1, 1]} : vector<4x384xf32> to vector<4x256xf32>
    %20 = vector.extract_strided_slice %18 {offsets = [0, 0], sizes = [4, 256], strides = [1, 1]} : vector<4x384xf32> to vector<4x256xf32>
    %21 = arith.addf %19, %20 : vector<4x256xf32>
    %cst_18 = arith.constant 5.000000e-01 : f32
    %22 = vector.broadcast %cst_18 : f32 to vector<4x256xf32>
    %23 = arith.mulf %22, %21 : vector<4x256xf32>
    %24 = math.tanh %23 : vector<4x256xf32>
    %cst_19 = arith.constant 5.000000e-01 : f32
    %25 = vector.broadcast %cst_19 : f32 to vector<4x256xf32>
    %26 = arith.mulf %25, %24 : vector<4x256xf32>
    %cst_20 = arith.constant 5.000000e-01 : f32
    %27 = vector.broadcast %cst_20 : f32 to vector<4x256xf32>
    %28 = arith.addf %26, %27 : vector<4x256xf32>
    %29 = vector.extract_strided_slice %28 {offsets = [0, 0], sizes = [4, 128], strides = [1, 1]} : vector<4x256xf32> to vector<4x128xf32>
    %30 = vector.extract_strided_slice %28 {offsets = [0, 128], sizes = [4, 128], strides = [1, 1]} : vector<4x256xf32> to vector<4x128xf32>
    %31 = vector.extract_strided_slice %16 {offsets = [0, 256], sizes = [4, 128], strides = [1, 1]} : vector<4x384xf32> to vector<4x128xf32>
    %32 = vector.extract_strided_slice %18 {offsets = [0, 256], sizes = [4, 128], strides = [1, 1]} : vector<4x384xf32> to vector<4x128xf32>
    %33 = vector.broadcast %2 : vector<1x128xf32> to vector<4x128xf32>
    %34 = arith.addf %32, %33 : vector<4x128xf32>
    %35 = arith.mulf %29, %34 : vector<4x128xf32>
    %36 = arith.addf %31, %35 : vector<4x128xf32>
    %37 = math.tanh %36 : vector<4x128xf32>
    %38 = arith.subf %12, %37 : vector<4x128xf32>
    %39 = arith.mulf %30, %38 : vector<4x128xf32>
    %40 = arith.addf %37, %39 : vector<4x128xf32>
    %c1_i32 = arith.constant 1 : i32
    %41 = arith.index_cast %c1_i32 : i32 to index
    %c0_21 = arith.constant 0 : index
    %c0_22 = arith.constant 0 : index
    %42 = vector.load %arg11[%41, %c0_21, %c0_22] : memref<8x4x384xbf16, #tpu.memory_space<vmem>>, vector<1x4x384xbf16>
    %43 = vector.shape_cast %42 : vector<1x4x384xbf16> to vector<4x384xbf16>
    %44 = arith.extf %43 : vector<4x384xbf16> to vector<4x384xf32>
    %45 = arith.truncf %40 : vector<4x128xf32> to vector<4x128xbf16>
    %cst_23 = arith.constant dense<0.000000e+00> : vector<4x384xf32>
    %46 = tpu.matmul %45, %1, %cst_23 {dimension_numbers = #tpu.dot_dimension_numbers<[1], [0], [0], [1], [0, 0, 1, 1], [], []>} : vector<4x128xbf16>, vector<128x384xbf16>, vector<4x384xf32> -> vector<4x384xf32>
    %47 = vector.extract_strided_slice %44 {offsets = [0, 0], sizes = [4, 256], strides = [1, 1]} : vector<4x384xf32> to vector<4x256xf32>
    %48 = vector.extract_strided_slice %46 {offsets = [0, 0], sizes = [4, 256], strides = [1, 1]} : vector<4x384xf32> to vector<4x256xf32>
    %49 = arith.addf %47, %48 : vector<4x256xf32>
    %cst_24 = arith.constant 5.000000e-01 : f32
    %50 = vector.broadcast %cst_24 : f32 to vector<4x256xf32>
    %51 = arith.mulf %50, %49 : vector<4x256xf32>
    %52 = math.tanh %51 : vector<4x256xf32>
    %cst_25 = arith.constant 5.000000e-01 : f32
    %53 = vector.broadcast %cst_25 : f32 to vector<4x256xf32>
    %54 = arith.mulf %53, %52 : vector<4x256xf32>
    %cst_26 = arith.constant 5.000000e-01 : f32
    %55 = vector.broadcast %cst_26 : f32 to vector<4x256xf32>
    %56 = arith.addf %54, %55 : vector<4x256xf32>
    %57 = vector.extract_strided_slice %56 {offsets = [0, 0], sizes = [4, 128], strides = [1, 1]} : vector<4x256xf32> to vector<4x128xf32>
    %58 = vector.extract_strided_slice %56 {offsets = [0, 128], sizes = [4, 128], strides = [1, 1]} : vector<4x256xf32> to vector<4x128xf32>
    %59 = vector.extract_strided_slice %44 {offsets = [0, 256], sizes = [4, 128], strides = [1, 1]} : vector<4x384xf32> to vector<4x128xf32>
    %60 = vector.extract_strided_slice %46 {offsets = [0, 256], sizes = [4, 128], strides = [1, 1]} : vector<4x384xf32> to vector<4x128xf32>
    %61 = vector.broadcast %2 : vector<1x128xf32> to vector<4x128xf32>
    %62 = arith.addf %60, %61 : vector<4x128xf32>
    %63 = arith.mulf %57, %62 : vector<4x128xf32>
    %64 = arith.addf %59, %63 : vector<4x128xf32>
    %65 = math.tanh %64 : vector<4x128xf32>
    %66 = arith.subf %40, %65 : vector<4x128xf32>
    %67 = arith.mulf %58, %66 : vector<4x128xf32>
    %68 = arith.addf %65, %67 : vector<4x128xf32>
    %c2_i32 = arith.constant 2 : i32
    %69 = arith.index_cast %c2_i32 : i32 to index
    %c0_27 = arith.constant 0 : index
    %c0_28 = arith.constant 0 : index
    %70 = vector.load %arg11[%69, %c0_27, %c0_28] : memref<8x4x384xbf16, #tpu.memory_space<vmem>>, vector<1x4x384xbf16>
    %71 = vector.shape_cast %70 : vector<1x4x384xbf16> to vector<4x384xbf16>
    %72 = arith.extf %71 : vector<4x384xbf16> to vector<4x384xf32>
    %73 = arith.truncf %68 : vector<4x128xf32> to vector<4x128xbf16>
    %cst_29 = arith.constant dense<0.000000e+00> : vector<4x384xf32>
    %74 = tpu.matmul %73, %1, %cst_29 {dimension_numbers = #tpu.dot_dimension_numbers<[1], [0], [0], [1], [0, 0, 1, 1], [], []>} : vector<4x128xbf16>, vector<128x384xbf16>, vector<4x384xf32> -> vector<4x384xf32>
    %75 = vector.extract_strided_slice %72 {offsets = [0, 0], sizes = [4, 256], strides = [1, 1]} : vector<4x384xf32> to vector<4x256xf32>
    %76 = vector.extract_strided_slice %74 {offsets = [0, 0], sizes = [4, 256], strides = [1, 1]} : vector<4x384xf32> to vector<4x256xf32>
    %77 = arith.addf %75, %76 : vector<4x256xf32>
    %cst_30 = arith.constant 5.000000e-01 : f32
    %78 = vector.broadcast %cst_30 : f32 to vector<4x256xf32>
    %79 = arith.mulf %78, %77 : vector<4x256xf32>
    %80 = math.tanh %79 : vector<4x256xf32>
    %cst_31 = arith.constant 5.000000e-01 : f32
    %81 = vector.broadcast %cst_31 : f32 to vector<4x256xf32>
    %82 = arith.mulf %81, %80 : vector<4x256xf32>
    %cst_32 = arith.constant 5.000000e-01 : f32
    %83 = vector.broadcast %cst_32 : f32 to vector<4x256xf32>
    %84 = arith.addf %82, %83 : vector<4x256xf32>
    %85 = vector.extract_strided_slice %84 {offsets = [0, 0], sizes = [4, 128], strides = [1, 1]} : vector<4x256xf32> to vector<4x128xf32>
    %86 = vector.extract_strided_slice %84 {offsets = [0, 128], sizes = [4, 128], strides = [1, 1]} : vector<4x256xf32> to vector<4x128xf32>
    %87 = vector.extract_strided_slice %72 {offsets = [0, 256], sizes = [4, 128], strides = [1, 1]} : vector<4x384xf32> to vector<4x128xf32>
    %88 = vector.extract_strided_slice %74 {offsets = [0, 256], sizes = [4, 128], strides = [1, 1]} : vector<4x384xf32> to vector<4x128xf32>
    %89 = vector.broadcast %2 : vector<1x128xf32> to vector<4x128xf32>
    %90 = arith.addf %88, %89 : vector<4x128xf32>
    %91 = arith.mulf %85, %90 : vector<4x128xf32>
    %92 = arith.addf %87, %91 : vector<4x128xf32>
    %93 = math.tanh %92 : vector<4x128xf32>
    %94 = arith.subf %68, %93 : vector<4x128xf32>
    %95 = arith.mulf %86, %94 : vector<4x128xf32>
    %96 = arith.addf %93, %95 : vector<4x128xf32>
    %c3_i32 = arith.constant 3 : i32
    %97 = arith.index_cast %c3_i32 : i32 to index
    %c0_33 = arith.constant 0 : index
    %c0_34 = arith.constant 0 : index
    %98 = vector.load %arg11[%97, %c0_33, %c0_34] : memref<8x4x384xbf16, #tpu.memory_space<vmem>>, vector<1x4x384xbf16>
    %99 = vector.shape_cast %98 : vector<1x4x384xbf16> to vector<4x384xbf16>
    %100 = arith.extf %99 : vector<4x384xbf16> to vector<4x384xf32>
    %101 = arith.truncf %96 : vector<4x128xf32> to vector<4x128xbf16>
    %cst_35 = arith.constant dense<0.000000e+00> : vector<4x384xf32>
    %102 = tpu.matmul %101, %1, %cst_35 {dimension_numbers = #tpu.dot_dimension_numbers<[1], [0], [0], [1], [0, 0, 1, 1], [], []>} : vector<4x128xbf16>, vector<128x384xbf16>, vector<4x384xf32> -> vector<4x384xf32>
    %103 = vector.extract_strided_slice %100 {offsets = [0, 0], sizes = [4, 256], strides = [1, 1]} : vector<4x384xf32> to vector<4x256xf32>
    %104 = vector.extract_strided_slice %102 {offsets = [0, 0], sizes = [4, 256], strides = [1, 1]} : vector<4x384xf32> to vector<4x256xf32>
    %105 = arith.addf %103, %104 : vector<4x256xf32>
    %cst_36 = arith.constant 5.000000e-01 : f32
    %106 = vector.broadcast %cst_36 : f32 to vector<4x256xf32>
    %107 = arith.mulf %106, %105 : vector<4x256xf32>
    %108 = math.tanh %107 : vector<4x256xf32>
    %cst_37 = arith.constant 5.000000e-01 : f32
    %109 = vector.broadcast %cst_37 : f32 to vector<4x256xf32>
    %110 = arith.mulf %109, %108 : vector<4x256xf32>
    %cst_38 = arith.constant 5.000000e-01 : f32
    %111 = vector.broadcast %cst_38 : f32 to vector<4x256xf32>
    %112 = arith.addf %110, %111 : vector<4x256xf32>
    %113 = vector.extract_strided_slice %112 {offsets = [0, 0], sizes = [4, 128], strides = [1, 1]} : vector<4x256xf32> to vector<4x128xf32>
    %114 = vector.extract_strided_slice %112 {offsets = [0, 128], sizes = [4, 128], strides = [1, 1]} : vector<4x256xf32> to vector<4x128xf32>
    %115 = vector.extract_strided_slice %100 {offsets = [0, 256], sizes = [4, 128], strides = [1, 1]} : vector<4x384xf32> to vector<4x128xf32>
    %116 = vector.extract_strided_slice %102 {offsets = [0, 256], sizes = [4, 128], strides = [1, 1]} : vector<4x384xf32> to vector<4x128xf32>
    %117 = vector.broadcast %2 : vector<1x128xf32> to vector<4x128xf32>
    %118 = arith.addf %116, %117 : vector<4x128xf32>
    %119 = arith.mulf %113, %118 : vector<4x128xf32>
    %120 = arith.addf %115, %119 : vector<4x128xf32>
    %121 = math.tanh %120 : vector<4x128xf32>
    %122 = arith.subf %96, %121 : vector<4x128xf32>
    %123 = arith.mulf %114, %122 : vector<4x128xf32>
    %124 = arith.addf %121, %123 : vector<4x128xf32>
    %c4_i32 = arith.constant 4 : i32
    %125 = arith.index_cast %c4_i32 : i32 to index
    %c0_39 = arith.constant 0 : index
    %c0_40 = arith.constant 0 : index
    %126 = vector.load %arg11[%125, %c0_39, %c0_40] : memref<8x4x384xbf16, #tpu.memory_space<vmem>>, vector<1x4x384xbf16>
    %127 = vector.shape_cast %126 : vector<1x4x384xbf16> to vector<4x384xbf16>
    %128 = arith.extf %127 : vector<4x384xbf16> to vector<4x384xf32>
    %129 = arith.truncf %124 : vector<4x128xf32> to vector<4x128xbf16>
    %cst_41 = arith.constant dense<0.000000e+00> : vector<4x384xf32>
    %130 = tpu.matmul %129, %1, %cst_41 {dimension_numbers = #tpu.dot_dimension_numbers<[1], [0], [0], [1], [0, 0, 1, 1], [], []>} : vector<4x128xbf16>, vector<128x384xbf16>, vector<4x384xf32> -> vector<4x384xf32>
    %131 = vector.extract_strided_slice %128 {offsets = [0, 0], sizes = [4, 256], strides = [1, 1]} : vector<4x384xf32> to vector<4x256xf32>
    %132 = vector.extract_strided_slice %130 {offsets = [0, 0], sizes = [4, 256], strides = [1, 1]} : vector<4x384xf32> to vector<4x256xf32>
    %133 = arith.addf %131, %132 : vector<4x256xf32>
    %cst_42 = arith.constant 5.000000e-01 : f32
    %134 = vector.broadcast %cst_42 : f32 to vector<4x256xf32>
    %135 = arith.mulf %134, %133 : vector<4x256xf32>
    %136 = math.tanh %135 : vector<4x256xf32>
    %cst_43 = arith.constant 5.000000e-01 : f32
    %137 = vector.broadcast %cst_43 : f32 to vector<4x256xf32>
    %138 = arith.mulf %137, %136 : vector<4x256xf32>
    %cst_44 = arith.constant 5.000000e-01 : f32
    %139 = vector.broadcast %cst_44 : f32 to vector<4x256xf32>
    %140 = arith.addf %138, %139 : vector<4x256xf32>
    %141 = vector.extract_strided_slice %140 {offsets = [0, 0], sizes = [4, 128], strides = [1, 1]} : vector<4x256xf32> to vector<4x128xf32>
    %142 = vector.extract_strided_slice %140 {offsets = [0, 128], sizes = [4, 128], strides = [1, 1]} : vector<4x256xf32> to vector<4x128xf32>
    %143 = vector.extract_strided_slice %128 {offsets = [0, 256], sizes = [4, 128], strides = [1, 1]} : vector<4x384xf32> to vector<4x128xf32>
    %144 = vector.extract_strided_slice %130 {offsets = [0, 256], sizes = [4, 128], strides = [1, 1]} : vector<4x384xf32> to vector<4x128xf32>
    %145 = vector.broadcast %2 : vector<1x128xf32> to vector<4x128xf32>
    %146 = arith.addf %144, %145 : vector<4x128xf32>
    %147 = arith.mulf %141, %146 : vector<4x128xf32>
    %148 = arith.addf %143, %147 : vector<4x128xf32>
    %149 = math.tanh %148 : vector<4x128xf32>
    %150 = arith.subf %124, %149 : vector<4x128xf32>
    %151 = arith.mulf %142, %150 : vector<4x128xf32>
    %152 = arith.addf %149, %151 : vector<4x128xf32>
    %c5_i32 = arith.constant 5 : i32
    %153 = arith.index_cast %c5_i32 : i32 to index
    %c0_45 = arith.constant 0 : index
    %c0_46 = arith.constant 0 : index
    %154 = vector.load %arg11[%153, %c0_45, %c0_46] : memref<8x4x384xbf16, #tpu.memory_space<vmem>>, vector<1x4x384xbf16>
    %155 = vector.shape_cast %154 : vector<1x4x384xbf16> to vector<4x384xbf16>
    %156 = arith.extf %155 : vector<4x384xbf16> to vector<4x384xf32>
    %157 = arith.truncf %152 : vector<4x128xf32> to vector<4x128xbf16>
    %cst_47 = arith.constant dense<0.000000e+00> : vector<4x384xf32>
    %158 = tpu.matmul %157, %1, %cst_47 {dimension_numbers = #tpu.dot_dimension_numbers<[1], [0], [0], [1], [0, 0, 1, 1], [], []>} : vector<4x128xbf16>, vector<128x384xbf16>, vector<4x384xf32> -> vector<4x384xf32>
    %159 = vector.extract_strided_slice %156 {offsets = [0, 0], sizes = [4, 256], strides = [1, 1]} : vector<4x384xf32> to vector<4x256xf32>
    %160 = vector.extract_strided_slice %158 {offsets = [0, 0], sizes = [4, 256], strides = [1, 1]} : vector<4x384xf32> to vector<4x256xf32>
    %161 = arith.addf %159, %160 : vector<4x256xf32>
    %cst_48 = arith.constant 5.000000e-01 : f32
    %162 = vector.broadcast %cst_48 : f32 to vector<4x256xf32>
    %163 = arith.mulf %162, %161 : vector<4x256xf32>
    %164 = math.tanh %163 : vector<4x256xf32>
    %cst_49 = arith.constant 5.000000e-01 : f32
    %165 = vector.broadcast %cst_49 : f32 to vector<4x256xf32>
    %166 = arith.mulf %165, %164 : vector<4x256xf32>
    %cst_50 = arith.constant 5.000000e-01 : f32
    %167 = vector.broadcast %cst_50 : f32 to vector<4x256xf32>
    %168 = arith.addf %166, %167 : vector<4x256xf32>
    %169 = vector.extract_strided_slice %168 {offsets = [0, 0], sizes = [4, 128], strides = [1, 1]} : vector<4x256xf32> to vector<4x128xf32>
    %170 = vector.extract_strided_slice %168 {offsets = [0, 128], sizes = [4, 128], strides = [1, 1]} : vector<4x256xf32> to vector<4x128xf32>
    %171 = vector.extract_strided_slice %156 {offsets = [0, 256], sizes = [4, 128], strides = [1, 1]} : vector<4x384xf32> to vector<4x128xf32>
    %172 = vector.extract_strided_slice %158 {offsets = [0, 256], sizes = [4, 128], strides = [1, 1]} : vector<4x384xf32> to vector<4x128xf32>
    %173 = vector.broadcast %2 : vector<1x128xf32> to vector<4x128xf32>
    %174 = arith.addf %172, %173 : vector<4x128xf32>
    %175 = arith.mulf %169, %174 : vector<4x128xf32>
    %176 = arith.addf %171, %175 : vector<4x128xf32>
    %177 = math.tanh %176 : vector<4x128xf32>
    %178 = arith.subf %152, %177 : vector<4x128xf32>
    %179 = arith.mulf %170, %178 : vector<4x128xf32>
    %180 = arith.addf %177, %179 : vector<4x128xf32>
    %c6_i32 = arith.constant 6 : i32
    %181 = arith.index_cast %c6_i32 : i32 to index
    %c0_51 = arith.constant 0 : index
    %c0_52 = arith.constant 0 : index
    %182 = vector.load %arg11[%181, %c0_51, %c0_52] : memref<8x4x384xbf16, #tpu.memory_space<vmem>>, vector<1x4x384xbf16>
    %183 = vector.shape_cast %182 : vector<1x4x384xbf16> to vector<4x384xbf16>
    %184 = arith.extf %183 : vector<4x384xbf16> to vector<4x384xf32>
    %185 = arith.truncf %180 : vector<4x128xf32> to vector<4x128xbf16>
    %cst_53 = arith.constant dense<0.000000e+00> : vector<4x384xf32>
    %186 = tpu.matmul %185, %1, %cst_53 {dimension_numbers = #tpu.dot_dimension_numbers<[1], [0], [0], [1], [0, 0, 1, 1], [], []>} : vector<4x128xbf16>, vector<128x384xbf16>, vector<4x384xf32> -> vector<4x384xf32>
    %187 = vector.extract_strided_slice %184 {offsets = [0, 0], sizes = [4, 256], strides = [1, 1]} : vector<4x384xf32> to vector<4x256xf32>
    %188 = vector.extract_strided_slice %186 {offsets = [0, 0], sizes = [4, 256], strides = [1, 1]} : vector<4x384xf32> to vector<4x256xf32>
    %189 = arith.addf %187, %188 : vector<4x256xf32>
    %cst_54 = arith.constant 5.000000e-01 : f32
    %190 = vector.broadcast %cst_54 : f32 to vector<4x256xf32>
    %191 = arith.mulf %190, %189 : vector<4x256xf32>
    %192 = math.tanh %191 : vector<4x256xf32>
    %cst_55 = arith.constant 5.000000e-01 : f32
    %193 = vector.broadcast %cst_55 : f32 to vector<4x256xf32>
    %194 = arith.mulf %193, %192 : vector<4x256xf32>
    %cst_56 = arith.constant 5.000000e-01 : f32
    %195 = vector.broadcast %cst_56 : f32 to vector<4x256xf32>
    %196 = arith.addf %194, %195 : vector<4x256xf32>
    %197 = vector.extract_strided_slice %196 {offsets = [0, 0], sizes = [4, 128], strides = [1, 1]} : vector<4x256xf32> to vector<4x128xf32>
    %198 = vector.extract_strided_slice %196 {offsets = [0, 128], sizes = [4, 128], strides = [1, 1]} : vector<4x256xf32> to vector<4x128xf32>
    %199 = vector.extract_strided_slice %184 {offsets = [0, 256], sizes = [4, 128], strides = [1, 1]} : vector<4x384xf32> to vector<4x128xf32>
    %200 = vector.extract_strided_slice %186 {offsets = [0, 256], sizes = [4, 128], strides = [1, 1]} : vector<4x384xf32> to vector<4x128xf32>
    %201 = vector.broadcast %2 : vector<1x128xf32> to vector<4x128xf32>
    %202 = arith.addf %200, %201 : vector<4x128xf32>
    %203 = arith.mulf %197, %202 : vector<4x128xf32>
    %204 = arith.addf %199, %203 : vector<4x128xf32>
    %205 = math.tanh %204 : vector<4x128xf32>
    %206 = arith.subf %180, %205 : vector<4x128xf32>
    %207 = arith.mulf %198, %206 : vector<4x128xf32>
    %208 = arith.addf %205, %207 : vector<4x128xf32>
    %c7_i32 = arith.constant 7 : i32
    %209 = arith.index_cast %c7_i32 : i32 to index
    %c0_57 = arith.constant 0 : index
    %c0_58 = arith.constant 0 : index
    %210 = vector.load %arg11[%209, %c0_57, %c0_58] : memref<8x4x384xbf16, #tpu.memory_space<vmem>>, vector<1x4x384xbf16>
    %211 = vector.shape_cast %210 : vector<1x4x384xbf16> to vector<4x384xbf16>
    %212 = arith.extf %211 : vector<4x384xbf16> to vector<4x384xf32>
    %213 = arith.truncf %208 : vector<4x128xf32> to vector<4x128xbf16>
    %cst_59 = arith.constant dense<0.000000e+00> : vector<4x384xf32>
    %214 = tpu.matmul %213, %1, %cst_59 {dimension_numbers = #tpu.dot_dimension_numbers<[1], [0], [0], [1], [0, 0, 1, 1], [], []>} : vector<4x128xbf16>, vector<128x384xbf16>, vector<4x384xf32> -> vector<4x384xf32>
    %215 = vector.extract_strided_slice %212 {offsets = [0, 0], sizes = [4, 256], strides = [1, 1]} : vector<4x384xf32> to vector<4x256xf32>
    %216 = vector.extract_strided_slice %214 {offsets = [0, 0], sizes = [4, 256], strides = [1, 1]} : vector<4x384xf32> to vector<4x256xf32>
    %217 = arith.addf %215, %216 : vector<4x256xf32>
    %cst_60 = arith.constant 5.000000e-01 : f32
    %218 = vector.broadcast %cst_60 : f32 to vector<4x256xf32>
    %219 = arith.mulf %218, %217 : vector<4x256xf32>
    %220 = math.tanh %219 : vector<4x256xf32>
    %cst_61 = arith.constant 5.000000e-01 : f32
    %221 = vector.broadcast %cst_61 : f32 to vector<4x256xf32>
    %222 = arith.mulf %221, %220 : vector<4x256xf32>
    %cst_62 = arith.constant 5.000000e-01 : f32
    %223 = vector.broadcast %cst_62 : f32 to vector<4x256xf32>
    %224 = arith.addf %222, %223 : vector<4x256xf32>
    %225 = vector.extract_strided_slice %224 {offsets = [0, 0], sizes = [4, 128], strides = [1, 1]} : vector<4x256xf32> to vector<4x128xf32>
    %226 = vector.extract_strided_slice %224 {offsets = [0, 128], sizes = [4, 128], strides = [1, 1]} : vector<4x256xf32> to vector<4x128xf32>
    %227 = vector.extract_strided_slice %212 {offsets = [0, 256], sizes = [4, 128], strides = [1, 1]} : vector<4x384xf32> to vector<4x128xf32>
    %228 = vector.extract_strided_slice %214 {offsets = [0, 256], sizes = [4, 128], strides = [1, 1]} : vector<4x384xf32> to vector<4x128xf32>
    %229 = vector.broadcast %2 : vector<1x128xf32> to vector<4x128xf32>
    %230 = arith.addf %228, %229 : vector<4x128xf32>
    %231 = arith.mulf %225, %230 : vector<4x128xf32>
    %232 = arith.addf %227, %231 : vector<4x128xf32>
    %233 = math.tanh %232 : vector<4x128xf32>
    %234 = arith.subf %208, %233 : vector<4x128xf32>
    %235 = arith.mulf %226, %234 : vector<4x128xf32>
    %236 = arith.addf %233, %235 : vector<4x128xf32>
    %c8_i32 = arith.constant 8 : i32
    %237 = vector.extract_strided_slice %236 {offsets = [0, 0], sizes = [2, 128], strides = [1, 1]} : vector<4x128xf32> to vector<2x128xf32>
    %238 = vector.extract_strided_slice %236 {offsets = [2, 0], sizes = [2, 128], strides = [1, 1]} : vector<4x128xf32> to vector<2x128xf32>
    %239 = arith.mulf %237, %238 : vector<2x128xf32>
    %240 = arith.subf %237, %238 : vector<2x128xf32>
    %241 = math.absf %240 : vector<2x128xf32>
    %c0_63 = arith.constant 0 : index
    %c0_64 = arith.constant 0 : index
    %242 = vector.load %arg6[%c0_63, %c0_64] : memref<256x128xbf16, #tpu.memory_space<vmem>>, vector<256x128xbf16>
    %243 = arith.truncf %239 : vector<2x128xf32> to vector<2x128xbf16>
    %244 = vector.extract_strided_slice %242 {offsets = [0, 0], sizes = [128, 128], strides = [1, 1]} : vector<256x128xbf16> to vector<128x128xbf16>
    %cst_65 = arith.constant dense<0.000000e+00> : vector<2x128xf32>
    %245 = tpu.matmul %243, %244, %cst_65 {dimension_numbers = #tpu.dot_dimension_numbers<[1], [0], [0], [1], [0, 0, 1, 1], [], []>} : vector<2x128xbf16>, vector<128x128xbf16>, vector<2x128xf32> -> vector<2x128xf32>
    %246 = arith.truncf %241 : vector<2x128xf32> to vector<2x128xbf16>
    %247 = vector.extract_strided_slice %242 {offsets = [128, 0], sizes = [128, 128], strides = [1, 1]} : vector<256x128xbf16> to vector<128x128xbf16>
    %cst_66 = arith.constant dense<0.000000e+00> : vector<2x128xf32>
    %248 = tpu.matmul %246, %247, %cst_66 {dimension_numbers = #tpu.dot_dimension_numbers<[1], [0], [0], [1], [0, 0, 1, 1], [], []>} : vector<2x128xbf16>, vector<128x128xbf16>, vector<2x128xf32> -> vector<2x128xf32>
    %249 = arith.addf %245, %248 : vector<2x128xf32>
    %c0_67 = arith.constant 0 : index
    %c0_68 = arith.constant 0 : index
    %250 = vector.load %arg7[%c0_67, %c0_68] : memref<1x128xf32, #tpu.memory_space<vmem>>, vector<1x128xf32>
    %251 = vector.broadcast %250 : vector<1x128xf32> to vector<2x128xf32>
    %252 = arith.addf %249, %251 : vector<2x128xf32>
    %cst_69 = arith.constant 5.000000e-01 : f32
    %253 = vector.broadcast %cst_69 : f32 to vector<2x128xf32>
    %254 = arith.mulf %253, %252 : vector<2x128xf32>
    %255 = math.tanh %254 : vector<2x128xf32>
    %cst_70 = arith.constant 5.000000e-01 : f32
    %256 = vector.broadcast %cst_70 : f32 to vector<2x128xf32>
    %257 = arith.mulf %256, %255 : vector<2x128xf32>
    %cst_71 = arith.constant 5.000000e-01 : f32
    %258 = vector.broadcast %cst_71 : f32 to vector<2x128xf32>
    %259 = arith.addf %257, %258 : vector<2x128xf32>
    %c0_72 = arith.constant 0 : index
    %c0_73 = arith.constant 0 : index
    %260 = vector.load %arg8[%c0_72, %c0_73] : memref<1x128xf32, #tpu.memory_space<vmem>>, vector<1x128xf32>
    %261 = vector.broadcast %260 : vector<1x128xf32> to vector<2x128xf32>
    %262 = arith.mulf %259, %261 : vector<2x128xf32>
    %cst_74 = arith.constant dense<0.000000e+00> : vector<2xf32>
    %263 = vector.multi_reduction <add>, %262, %cst_74 [1] : vector<2x128xf32> to vector<2xf32>
    %264 = vector.shape_cast %263 : vector<2xf32> to vector<2x1xf32>
    %c0_75 = arith.constant 0 : index
    %c0_76 = arith.constant 0 : index
    %265 = vector.load %arg9[%c0_75, %c0_76] : memref<1x1xf32, #tpu.memory_space<vmem>>, vector<1x1xf32>
    %266 = vector.broadcast %265 : vector<1x1xf32> to vector<2x1xf32>
    %267 = arith.addf %264, %266 : vector<2x1xf32>
    %cst_77 = arith.constant 5.000000e-01 : f32
    %268 = vector.broadcast %cst_77 : f32 to vector<2x1xf32>
    %269 = arith.mulf %268, %267 : vector<2x1xf32>
    %270 = math.tanh %269 : vector<2x1xf32>
    %cst_78 = arith.constant 5.000000e-01 : f32
    %271 = vector.broadcast %cst_78 : f32 to vector<2x1xf32>
    %272 = arith.mulf %271, %270 : vector<2x1xf32>
    %cst_79 = arith.constant 5.000000e-01 : f32
    %273 = vector.broadcast %cst_79 : f32 to vector<2x1xf32>
    %274 = arith.addf %272, %273 : vector<2x1xf32>
    %c0_80 = arith.constant 0 : index
    %c0_81 = arith.constant 0 : index
    %275 = vector.load %arg10[%c0_80, %c0_81] : memref<2x1xf32, #tpu.memory_space<vmem>>, vector<2x1xf32>
    tpu.vector_store %arg10[%c0_80, %c0_81], %274 {strides = array<i32>} : memref<2x1xf32, #tpu.memory_space<vmem>>, vector<2x1xf32>,
    return
  }
  func.func @transform_0(%arg0: i32) -> (i32, i32, i32, i32) {
    %c0_i32 = arith.constant 0 : i32
    %c0_i32_0 = arith.constant 0 : i32
    %c0_i32_1 = arith.constant 0 : i32
    %c0_i32_2 = arith.constant 0 : i32
    return %c0_i32, %c0_i32_0, %arg0, %c0_i32_1 : i32, i32, i32, i32
  }
  func.func @transform_1(%arg0: i32) -> (i32, i32) {
    %c0_i32 = arith.constant 0 : i32
    %c0_i32_0 = arith.constant 0 : i32
    %c0_i32_1 = arith.constant 0 : i32
    return %c0_i32, %c0_i32_0 : i32, i32
  }
  func.func @transform_2(%arg0: i32) -> (i32, i32) {
    %c0_i32 = arith.constant 0 : i32
    %c0_i32_0 = arith.constant 0 : i32
    %c0_i32_1 = arith.constant 0 : i32
    return %c0_i32, %c0_i32_0 : i32, i32
  }
  func.func @transform_3(%arg0: i32) -> (i32, i32) {
    %c0_i32 = arith.constant 0 : i32
    %c0_i32_0 = arith.constant 0 : i32
    %c0_i32_1 = arith.constant 0 : i32
    return %c0_i32, %c0_i32_0 : i32, i32
  }
  func.func @transform_4(%arg0: i32) -> (i32, i32) {
    %c0_i32 = arith.constant 0 : i32
    %c0_i32_0 = arith.constant 0 : i32
    %c0_i32_1 = arith.constant 0 : i32
    return %c0_i32, %c0_i32_0 : i32, i32
  }
  func.func @transform_5(%arg0: i32) -> (i32, i32) {
    %c0_i32 = arith.constant 0 : i32
    %c0_i32_0 = arith.constant 0 : i32
    %c0_i32_1 = arith.constant 0 : i32
    return %c0_i32, %c0_i32_0 : i32, i32
  }
  func.func @transform_6(%arg0: i32) -> (i32, i32) {
    %c0_i32 = arith.constant 0 : i32
    %c0_i32_0 = arith.constant 0 : i32
    %c0_i32_1 = arith.constant 0 : i32
    return %c0_i32, %c0_i32_0 : i32, i32
  }
  func.func @transform_7(%arg0: i32) -> (i32, i32) {
    %c0_i32 = arith.constant 0 : i32
    %c0_i32_0 = arith.constant 0 : i32
    %c0_i32_1 = arith.constant 0 : i32
    return %c0_i32, %c0_i32_0 : i32, i32
  }
  func.func @transform_8(%arg0: i32) -> (i32, i32) {
    %c0_i32 = arith.constant 0 : i32
    %c0_i32_0 = arith.constant 0 : i32
    %c0_i32_1 = arith.constant 0 : i32
    return %c0_i32, %c0_i32_0 : i32, i32
  }
  func.func @transform_9(%arg0: i32) -> (i32, i32) {
    %c0_i32 = arith.constant 0 : i32
    %c0_i32_0 = arith.constant 0 : i32
    return %arg0, %c0_i32 : i32, i32
  }
}

</mosaic_0001>

<llo_original>
// kernel: tpu_custom_call.1
$region0: #{tpu_custom_call.1}
  #allocation0 [shape = 'u32[]', space=smem, size = 0x4, offset = 0x4, fixed_abs, tag = 'smem constant byte address 0x4 - core index']
  #allocation1 [shape = 'u32[144,128]{1,0:T(1,128)}', space=vmem, size = 0x12000, scoped, tag = 'internal scratch']
  #allocation2 [shape = 'bf16[8,4,384]{2,1,0:T(4,128)(2,1)}', space=vmem, size = 0x6000, scoped, tag = 'scratch operand']
  #allocation3 [shape = 'f32[1,1]{1,0:T(1,128)S(1)}', space=vmem, size = 0x200, scoped, tag = 'scoped memory for tpu_custom_call.1']
  %s0 = inlined_call_operand.hbm [shape: bf16[8,2,2,16], index: 0, kind: input, shape index: {}]
  %s1 = inlined_call_operand.hbm [shape: bf16[16,384], index: 1, kind: input, shape index: {}]
  %s2 = inlined_call_operand.hbm [shape: bf16[128,384], index: 2, kind: input, shape index: {}]
  %s3 = inlined_call_operand.vmem [shape: f32[1,384], index: 3, kind: input, shape index: {}]
  %s4 = inlined_call_operand.vmem [shape: f32[1,128], index: 4, kind: input, shape index: {}]
  %s5 = inlined_call_operand.hbm [shape: bf16[256,128], index: 5, kind: input, shape index: {}]
  %s6 = inlined_call_operand.vmem [shape: f32[1,128], index: 6, kind: input, shape index: {}]
  %s7 = inlined_call_operand.vmem [shape: f32[1,128], index: 7, kind: input, shape index: {}]
  %s8 = inlined_call_operand.<no memory space> [shape: f32[1,1], index: 8, kind: input, shape index: {}]
  %s9 = inlined_call_operand.vmem [shape: f32[2,1], index: 9, kind: output, shape index: {}]
  %s10 = sld [smem:[#allocation0]]
  $region62: #{tpu_custom_call.1} parent=0
    _
  %s12 = ssub.s32 1, %s10
  %s13 = scalar_select 0, %s12, %s10
  %v14 = vstv %s8
  %15 = vst [vmem:[#allocation3] sm:$0x1] %v14
  $region1: #{tpu_custom_call.1} parent=0
    #allocation4 [shape = 'u8[8192]{0}', space=vmem, size = 0x2000, scoped, tag = 'input window, operand 0, single buffered']
    #allocation5 [shape = 's32[1]{0}', space=sflag, size = 0x4, scoped, tag = 'scoped memory for tpu_custom_call.1']
    #allocation6 [shape = 'u8[12288]{0}', space=vmem, size = 0x3000, scoped, tag = 'input window, operand 1, single buffered']
    #allocation7 [shape = 's32[1]{0}', space=sflag, size = 0x4, scoped, tag = 'scoped memory for tpu_custom_call.1']
    #allocation8 [shape = 'u8[98304]{0}', space=vmem, size = 0x18000, scoped, tag = 'input window, operand 2, single buffered']
    #allocation9 [shape = 'u8[65536]{0}', space=vmem, size = 0x10000, scoped, tag = 'input window, operand 5, single buffered']
    #allocation10 [shape = 's32[1]{0}', space=sflag, size = 0x4, scoped, tag = 'scoped memory for tpu_custom_call.1']
    %16 = vsyncpa [#allocation5], 0
    %17 = vsyncpa [#allocation7], 0
    %18 = vsyncpa [#allocation10], 0
    // Predicated region
    $region2: #{tpu_custom_call.1} parent=1 // pred_check
      _
    $region3: #{tpu_custom_call.1} parent=1 // pred_check_branch
      %20 = sbr.rel (0) target = $region5
    $region4: #{tpu_custom_call.1} parent=1 // pred_region
      %s22 = ssub.s32 256, 256
      %23 = vsyncadd [#allocation5], %s22
      %s24 = sshll.u32 [#allocation4], 4
      %s25 = int_to_ptr.vmem [resolvable:$true] %s24
      %30 = dma.hbm_to_vmem [thread:$0]  %s0, 256, %s25, [#allocation5], 16, 16, 1
    $region5: #{tpu_custom_call.1} parent=1 // pred_fallthru
      _
    // Predicated region
    $region6: #{tpu_custom_call.1} parent=1 // pred_check
      _
    $region7: #{tpu_custom_call.1} parent=1 // pred_check_branch
      %32 = sbr.rel (0) target = $region9
    $region8: #{tpu_custom_call.1} parent=1 // pred_region
      %s34 = ssub.s32 384, 384
      %35 = vsyncadd [#allocation7], %s34
      %s36 = sshll.u32 [#allocation6], 4
      %s37 = int_to_ptr.vmem [resolvable:$true] %s36
      %42 = dma.hbm_to_vmem [thread:$0]  %s1, 384, %s37, [#allocation7], 192, 192, 12
    $region9: #{tpu_custom_call.1} parent=1 // pred_fallthru
      _
    // Predicated region
    $region10: #{tpu_custom_call.1} parent=1 // pred_check
      _
    $region11: #{tpu_custom_call.1} parent=1 // pred_check_branch
      %44 = sbr.rel (0) target = $region13
    $region12: #{tpu_custom_call.1} parent=1 // pred_region
      %s46 = ssub.s32 3072, 3072
      %47 = vsyncadd [#allocation7], %s46
      %s48 = sshll.u32 [#allocation8], 4
      %s49 = int_to_ptr.vmem [resolvable:$true] %s48
      %54 = dma.hbm_to_vmem [thread:$0]  %s2, 3072, %s49, [#allocation7], 192, 192, 12
    $region13: #{tpu_custom_call.1} parent=1 // pred_fallthru
      _
    // Predicated region
    $region14: #{tpu_custom_call.1} parent=1 // pred_check
      _
    $region15: #{tpu_custom_call.1} parent=1 // pred_check_branch
      %56 = sbr.rel (0) target = $region17
    $region16: #{tpu_custom_call.1} parent=1 // pred_region
      _
    $region17: #{tpu_custom_call.1} parent=1 // pred_fallthru
      _
    // Predicated region
    $region18: #{tpu_custom_call.1} parent=1 // pred_check
      _
    $region19: #{tpu_custom_call.1} parent=1 // pred_check_branch
      %58 = sbr.rel (0) target = $region21
    $region20: #{tpu_custom_call.1} parent=1 // pred_region
      _
    $region21: #{tpu_custom_call.1} parent=1 // pred_fallthru
      _
    // Predicated region
    $region22: #{tpu_custom_call.1} parent=1 // pred_check
      _
    $region23: #{tpu_custom_call.1} parent=1 // pred_check_branch
      %60 = sbr.rel (0) target = $region25
    $region24: #{tpu_custom_call.1} parent=1 // pred_region
      %s62 = ssub.s32 2048, 2048
      %63 = vsyncadd [#allocation10], %s62
      %s64 = sshll.u32 [#allocation9], 4
      %s65 = int_to_ptr.vmem [resolvable:$true] %s64
      %70 = dma.hbm_to_vmem [thread:$0]  %s5, 2048, %s65, [#allocation10], 64, 64, 4
    $region25: #{tpu_custom_call.1} parent=1 // pred_fallthru
      _
    // Predicated region
    $region26: #{tpu_custom_call.1} parent=1 // pred_check
      _
    $region27: #{tpu_custom_call.1} parent=1 // pred_check_branch
      %72 = sbr.rel (0) target = $region29
    $region28: #{tpu_custom_call.1} parent=1 // pred_region
      _
    $region29: #{tpu_custom_call.1} parent=1 // pred_fallthru
      _
    // Predicated region
    $region30: #{tpu_custom_call.1} parent=1 // pred_check
      _
    $region31: #{tpu_custom_call.1} parent=1 // pred_check_branch
      %74 = sbr.rel (0) target = $region33
    $region32: #{tpu_custom_call.1} parent=1 // pred_region
      _
    $region33: #{tpu_custom_call.1} parent=1 // pred_fallthru
      _
    // Predicated region
    $region34: #{tpu_custom_call.1} parent=1 // pred_check
      _
    $region35: #{tpu_custom_call.1} parent=1 // pred_check_branch
      %76 = sbr.rel (0) target = $region37
    $region36: #{tpu_custom_call.1} parent=1 // pred_region
      _
    $region37: #{tpu_custom_call.1} parent=1 // pred_fallthru
      _
    // Predicated region
    $region38: #{tpu_custom_call.1} parent=1 // pred_check
      _
    $region39: #{tpu_custom_call.1} parent=1 // pred_check_branch
      %78 = sbr.rel (0) target = $region41
    $region40: #{tpu_custom_call.1} parent=1 // pred_region
      %79 = dma.done [#allocation5], 256
    $region41: #{tpu_custom_call.1} parent=1 // pred_fallthru
      _
    // Predicated region
    $region42: #{tpu_custom_call.1} parent=1 // pred_check
      _
    $region43: #{tpu_custom_call.1} parent=1 // pred_check_branch
      %81 = sbr.rel (0) target = $region45
    $region44: #{tpu_custom_call.1} parent=1 // pred_region
      %82 = dma.done [#allocation7], 384
    $region45: #{tpu_custom_call.1} parent=1 // pred_fallthru
      _
    // Predicated region
    $region46: #{tpu_custom_call.1} parent=1 // pred_check
      _
    $region47: #{tpu_custom_call.1} parent=1 // pred_check_branch
      %84 = sbr.rel (0) target = $region49
    $region48: #{tpu_custom_call.1} parent=1 // pred_region
      %85 = dma.done [#allocation7], 3072
    $region49: #{tpu_custom_call.1} parent=1 // pred_fallthru
      _
    // Predicated region
    $region50: #{tpu_custom_call.1} parent=1 // pred_check
      _
    $region51: #{tpu_custom_call.1} parent=1 // pred_check_branch
      %87 = sbr.rel (0) target = $region53
    $region52: #{tpu_custom_call.1} parent=1 // pred_region
      %88 = dma.done [#allocation10], 2048
    $region53: #{tpu_custom_call.1} parent=1 // pred_fallthru
      _
    %v90 = vld [vmem:[#allocation6] sm:$0xff]
    %v91 = vld [vmem:[#allocation6 + $0x8] sm:$0xf]
    %v92 = vld [vmem:[#allocation6 + $0xc] sm:$0xff]
    %v93 = vld [vmem:[#allocation6 + $0x14] sm:$0xf]
    %v94 = vld [vmem:[#allocation8] sm:$0xff]
    %v95 = vld [vmem:[#allocation8 + $0x8] sm:$0xf]
    %v96 = vld [vmem:[#allocation8 + $0xc] sm:$0xff]
    %v97 = vld [vmem:[#allocation8 + $0x14] sm:$0xf]
    %v98 = vld [vmem:[#allocation8 + $0x18] sm:$0xff]
    %v99 = vld [vmem:[#allocation8 + $0x20] sm:$0xf]
    %v100 = vld [vmem:[#allocation8 + $0x24] sm:$0xff]
    %v101 = vld [vmem:[#allocation8 + $0x2c] sm:$0xf]
    %v102 = vld [vmem:[#allocation8 + $0x30] sm:$0xff]
    %v103 = vld [vmem:[#allocation8 + $0x38] sm:$0xf]
    %v104 = vld [vmem:[#allocation8 + $0x3c] sm:$0xff]
    %v105 = vld [vmem:[#allocation8 + $0x44] sm:$0xf]
    %v106 = vld [vmem:[#allocation8 + $0x48] sm:$0xff]
    %v107 = vld [vmem:[#allocation8 + $0x50] sm:$0xf]
    %v108 = vld [vmem:[#allocation8 + $0x54] sm:$0xff]
    %v109 = vld [vmem:[#allocation8 + $0x5c] sm:$0xf]
    %v110 = vld [vmem:[#allocation8 + $0x60] sm:$0xff]
    %v111 = vld [vmem:[#allocation8 + $0x68] sm:$0xf]
    %v112 = vld [vmem:[#allocation8 + $0x6c] sm:$0xff]
    %v113 = vld [vmem:[#allocation8 + $0x74] sm:$0xf]
    %v114 = vld [vmem:[#allocation8 + $0x78] sm:$0xff]
    %v115 = vld [vmem:[#allocation8 + $0x80] sm:$0xf]
    %v116 = vld [vmem:[#allocation8 + $0x84] sm:$0xff]
    %v117 = vld [vmem:[#allocation8 + $0x8c] sm:$0xf]
    %v118 = vld [vmem:[#allocation8 + $0x90] sm:$0xff]
    %v119 = vld [vmem:[#allocation8 + $0x98] sm:$0xf]
    %v120 = vld [vmem:[#allocation8 + $0x9c] sm:$0xff]
    %v121 = vld [vmem:[#allocation8 + $0xa4] sm:$0xf]
    %v122 = vld [vmem:[#allocation8 + $0xa8] sm:$0xff]
    %v123 = vld [vmem:[#allocation8 + $0xb0] sm:$0xf]
    %v124 = vld [vmem:[#allocation8 + $0xb4] sm:$0xff]
    %v125 = vld [vmem:[#allocation8 + $0xbc] sm:$0xf]
    %v126 = vld [vmem:[%s4] sm:$0x1]
    %v127 = vld [vmem:[#allocation4] sm:$0x1]
    %v128 = vld [vmem:[#allocation4 + $0x1] sm:$0x1]
    %v129 = vld [vmem:[#allocation4 + $0x2] sm:$0x1]
    %v130 = vld [vmem:[#allocation4 + $0x3] sm:$0x1]
    %v131 = vld [vmem:[#allocation4 + $0x4] sm:$0x1]
    %v132 = vld [vmem:[#allocation4 + $0x5] sm:$0x1]
    %v133 = vld [vmem:[#allocation4 + $0x6] sm:$0x1]
    %v134 = vld [vmem:[#allocation4 + $0x7] sm:$0x1]
    %v135 = vld [vmem:[#allocation4 + $0x8] sm:$0x1]
    %v136 = vld [vmem:[#allocation4 + $0x9] sm:$0x1]
    %v137 = vld [vmem:[#allocation4 + $0xa] sm:$0x1]
    %v138 = vld [vmem:[#allocation4 + $0xb] sm:$0x1]
    %v139 = vld [vmem:[#allocation4 + $0xc] sm:$0x1]
    %v140 = vld [vmem:[#allocation4 + $0xd] sm:$0x1]
    %v141 = vld [vmem:[#allocation4 + $0xe] sm:$0x1]
    %v142 = vld [vmem:[#allocation4 + $0xf] sm:$0x1]
    %v143 = vld [vmem:[%s3] sm:$0x7]
    %v145 = vlaneseq
    %v146 = vshrl.u32 %v145, 7
    %v147 = vsub.s32 0, %v146
    %v148 = vrot.slane %v143, %v147
    %v149 = vlaneseq
    %v150 = vshrl.u32 %v149, 7
    %v151 = vsub.s32 1, %v150
    %v152 = vrot.slane %v143, %v151
    %v153 = vlaneseq
    %v154 = vshrl.u32 %v153, 7
    %v155 = vsub.s32 2, %v154
    %v156 = vrot.slane %v143, %v155
    %v176 = vcombine.low %v127, %v128
    %v177 = vcombine.low %v129, %v130
    %v178 = vcombine.low %v131, %v132
    %v179 = vcombine.low %v133, %v134
    %v181 = vunpack.c.l.s4 1966171168
    %v182 = vunpack.c.0.s8 %v181
    %v183 = vlaneseq
    %v184 = vshrl.u32 %v183, 7
    %v185 = vsub.s32 %v182, %v184
    %v186 = vrot.slane %v176, %v185
    %v188 = vunpack.c.l.s4 1966171168
    %v189 = vunpack.c.0.s8 %v188
    %v190 = vlaneseq
    %v191 = vshrl.u32 %v190, 7
    %v192 = vsub.s32 %v189, %v191
    %v193 = vrot.slane %v177, %v192
    %v195 = vunpack.c.l.s4 1966171168
    %v196 = vunpack.c.0.s8 %v195
    %v197 = vlaneseq
    %v198 = vshrl.u32 %v197, 7
    %v199 = vsub.s32 %v196, %v198
    %v200 = vrot.slane %v178, %v199
    %v202 = vunpack.c.l.s4 1966171168
    %v203 = vunpack.c.0.s8 %v202
    %v204 = vlaneseq
    %v205 = vshrl.u32 %v204, 7
    %v206 = vsub.s32 %v203, %v205
    %v207 = vrot.slane %v179, %v206
    %v208 = vcombine.low %v186, %v193
    %v209 = vcombine.low %v200, %v207
    %v211 = vunpack.c.l.s4 1966171168
    %v212 = vunpack.c.0.s8 %v211
    %v213 = vlaneseq
    %v214 = vshrl.u32 %v213, 7
    %v215 = vsub.s32 %v212, %v214
    %v216 = vrot.slane %v208, %v215
    %v218 = vunpack.c.l.s4 1966171168
    %v219 = vunpack.c.0.s8 %v218
    %v220 = vlaneseq
    %v221 = vshrl.u32 %v220, 7
    %v222 = vsub.s32 %v219, %v221
    %v223 = vrot.slane %v209, %v222
    %v224 = vcombine.low %v216, %v223
    %v225 = vcombine.low %v135, %v136
    %v226 = vcombine.low %v137, %v138
    %v227 = vcombine.low %v139, %v140
    %v228 = vcombine.low %v141, %v142
    %v230 = vunpack.c.l.s4 1966171168
    %v231 = vunpack.c.0.s8 %v230
    %v232 = vlaneseq
    %v233 = vshrl.u32 %v232, 7
    %v234 = vsub.s32 %v231, %v233
    %v235 = vrot.slane %v225, %v234
    %v237 = vunpack.c.l.s4 1966171168
    %v238 = vunpack.c.0.s8 %v237
    %v239 = vlaneseq
    %v240 = vshrl.u32 %v239, 7
    %v241 = vsub.s32 %v238, %v240
    %v242 = vrot.slane %v226, %v241
    %v244 = vunpack.c.l.s4 1966171168
    %v245 = vunpack.c.0.s8 %v244
    %v246 = vlaneseq
    %v247 = vshrl.u32 %v246, 7
    %v248 = vsub.s32 %v245, %v247
    %v249 = vrot.slane %v227, %v248
    %v251 = vunpack.c.l.s4 1966171168
    %v252 = vunpack.c.0.s8 %v251
    %v253 = vlaneseq
    %v254 = vshrl.u32 %v253, 7
    %v255 = vsub.s32 %v252, %v254
    %v256 = vrot.slane %v228, %v255
    %v257 = vcombine.low %v235, %v242
    %v258 = vcombine.low %v249, %v256
    %v260 = vunpack.c.l.s4 1966171168
    %v261 = vunpack.c.0.s8 %v260
    %v262 = vlaneseq
    %v263 = vshrl.u32 %v262, 7
    %v264 = vsub.s32 %v261, %v263
    %v265 = vrot.slane %v257, %v264
    %v267 = vunpack.c.l.s4 1966171168
    %v268 = vunpack.c.0.s8 %v267
    %v269 = vlaneseq
    %v270 = vshrl.u32 %v269, 7
    %v271 = vsub.s32 %v268, %v270
    %v272 = vrot.slane %v258, %v271
    %v273 = vcombine.low %v265, %v272
    %v278 = vunpack.c.l.b16 %v90
    %v279 = vunpack.c.h.b16 %v90
    %v280 = vunpack.c.l.b16 %v91
    %v281 = vunpack.c.l.b16 %v92
    %v282 = vunpack.c.h.b16 %v92
    %v283 = vunpack.c.l.b16 %v93
    %v284 = vpack.c.b16 %v281, %v278
    %v285 = vpack.c.b16 %v282, %v279
    %v286 = vpack.c.b16 %v283, %v280
    %vm290 = vcmask 130048
    %v292 = vsel %vm290, %v224, 0
    %v295 = vsel %vm290, %v273, 0
    %297 = vmatprep.subr.bf16.mxu0 %v285
    %298 = vmatpush1.bf16.msra.mxu0 %v284
    %299 = vmatprep.subr.bf16.mxu0 0
    %300 = vmatpush1.bf16.msra.mxu0 0
    %301 = vmatprep.subr.bf16.mxu0 0
    %302 = vmatpush1.bf16.msra.mxu0 0
    %303 = vmatprep.subr.bf16.mxu0 0
    %304 = vmatpush1.bf16.msra.mxu0 0
    %305 = vmatprep.subr.bf16.mxu0 0
    %306 = vmatpush1.bf16.msra.mxu0 0
    %307 = vmatprep.subr.bf16.mxu0 0
    %308 = vmatpush1.bf16.msra.mxu0 0
    %309 = vmatprep.subr.bf16.mxu0 0
    %310 = vmatpush1.bf16.msra.mxu0 0
    %311 = vmatprep.subr.bf16.mxu0 0
    %312 = vmatpush1.bf16.msra.mxu0 0
    %313 = vmatprep.subr.bf16.mxu0 0
    %314 = vmatpush1.bf16.msra.mxu0 0
    %315 = vmatprep.subr.bf16.mxu0 0
    %316 = vmatpush1.bf16.msra.mxu0 0
    %317 = vmatprep.subr.bf16.mxu0 0
    %318 = vmatpush1.bf16.msra.mxu0 0
    %319 = vmatprep.subr.bf16.mxu0 0
    %320 = vmatpush1.bf16.msra.mxu0 0
    %321 = vmatprep.subr.bf16.mxu0 0
    %322 = vmatpush1.bf16.msra.mxu0 0
    %323 = vmatprep.subr.bf16.mxu0 0
    %324 = vmatpush1.bf16.msra.mxu0 0
    %325 = vmatprep.subr.bf16.mxu0 0
    %326 = vmatpush1.bf16.msra.mxu0 0
    %327 = vmatprep.subr.bf16.mxu0 0
    %328 = vmatpush1.bf16.msra.mxu0 0
    %329 = vmatprep.mubr.bf16.mxu0 0
    %330 = vmatmul.mubr.bf16.gmra.mrb[0].mxu0 %v292
    %v331 = vpop.f32.mrb[0].mxu0
    %v332 = vadd.f32 %v148, %v331
    %v333 = vpop.f32.mrb[0].mxu0
    %v334 = vadd.f32 %v152, %v333
    %v335 = vpop.f32.mrb[0].mxu0
    %v336 = vadd.f32 %v148, %v335
    %v337 = vpop.f32.mrb[0].mxu0
    %v338 = vadd.f32 %v152, %v337
    %339 = vmatprep.mubr.bf16.mxu0 0
    %340 = vmatmul.mubr.bf16.gmra.mrb[0].mxu0 %v295
    %v341 = vpop.f32.mrb[0].mxu0
    %v342 = vadd.f32 %v148, %v341
    %v343 = vpop.f32.mrb[0].mxu0
    %v344 = vadd.f32 %v152, %v343
    %v345 = vpop.f32.mrb[0].mxu0
    %v346 = vadd.f32 %v148, %v345
    %v347 = vpop.f32.mrb[0].mxu0
    %v348 = vadd.f32 %v152, %v347
    %349 = vdwg.mxu0
    %350 = vmatprep.subr.bf16.mxu0 0
    %351 = vmatpush1.bf16.msra.mxu0 %v286
    %352 = vmatprep.subr.bf16.mxu0 0
    %353 = vmatpush1.bf16.msra.mxu0 0
    %354 = vmatprep.subr.bf16.mxu0 0
    %355 = vmatpush1.bf16.msra.mxu0 0
    %356 = vmatprep.subr.bf16.mxu0 0
    %357 = vmatpush1.bf16.msra.mxu0 0
    %358 = vmatprep.subr.bf16.mxu0 0
    %359 = vmatpush1.bf16.msra.mxu0 0
    %360 = vmatprep.subr.bf16.mxu0 0
    %361 = vmatpush1.bf16.msra.mxu0 0
    %362 = vmatprep.subr.bf16.mxu0 0
    %363 = vmatpush1.bf16.msra.mxu0 0
    %364 = vmatprep.subr.bf16.mxu0 0
    %365 = vmatpush1.bf16.msra.mxu0 0
    %366 = vmatprep.subr.bf16.mxu0 0
    %367 = vmatpush1.bf16.msra.mxu0 0
    %368 = vmatprep.subr.bf16.mxu0 0
    %369 = vmatpush1.bf16.msra.mxu0 0
    %370 = vmatprep.subr.bf16.mxu0 0
    %371 = vmatpush1.bf16.msra.mxu0 0
    %372 = vmatprep.subr.bf16.mxu0 0
    %373 = vmatpush1.bf16.msra.mxu0 0
    %374 = vmatprep.subr.bf16.mxu0 0
    %375 = vmatpush1.bf16.msra.mxu0 0
    %376 = vmatprep.subr.bf16.mxu0 0
    %377 = vmatpush1.bf16.msra.mxu0 0
    %378 = vmatprep.subr.bf16.mxu0 0
    %379 = vmatpush1.bf16.msra.mxu0 0
    %380 = vmatprep.subr.bf16.mxu0 0
    %381 = vmatpush1.bf16.msra.mxu0 0
    %382 = vmatprep.mubr.bf16.mxu0 0
    %383 = vmatmul.mubr.bf16.gmra.mrb[0].mxu0 %v292
    %v384 = vpop.f32.mrb[0].mxu0
    %v385 = vadd.f32 %v156, %v384
    %v386 = vpop.f32.mrb[0].mxu0
    %v387 = vpop.f32.mrb[0].mxu0
    %v388 = vadd.f32 %v156, %v387
    %v389 = vpop.f32.mrb[0].mxu0
    %390 = vmatprep.mubr.bf16.mxu0 0
    %391 = vmatmul.mubr.bf16.gmra.mrb[0].mxu0 %v295
    %v392 = vpop.f32.mrb[0].mxu0
    %v393 = vadd.f32 %v156, %v392
    %v394 = vpop.f32.mrb[0].mxu0
    %v395 = vpop.f32.mrb[0].mxu0
    %v396 = vadd.f32 %v156, %v395
    %v397 = vpop.f32.mrb[0].mxu0
    %398 = vdwg.mxu0
    %v411 = vcombine.low %v332, %v334
    %v412 = vcombine.high %v332, %v334
    %v413 = vcombine.high %v385, %v385
    %v414 = vcombine.low %v336, %v338
    %v415 = vcombine.high %v336, %v338
    %v416 = vcombine.high %v388, %v388
    %v417 = vcombine.low %v342, %v344
    %v418 = vcombine.high %v342, %v344
    %v419 = vcombine.high %v393, %v393
    %v420 = vcombine.low %v346, %v348
    %v421 = vcombine.high %v346, %v348
    %v422 = vcombine.high %v396, %v396
    %v435 = vcombine.high %v411, %v411
    %v436 = vcombine.high %v412, %v412
    %v437 = vcombine.high %v414, %v414
    %v438 = vcombine.high %v415, %v415
    %v439 = vcombine.high %v417, %v417
    %v440 = vcombine.high %v418, %v418
    %v441 = vcombine.high %v420, %v420
    %v442 = vcombine.high %v421, %v421
    %v451 = vpack.c.bf16 %v411, %v411
    %v452 = vpack.c.bf16 %v435, %v435
    %v453 = vpack.c.bf16 %v385, %v385
    %v454 = vpack.c.bf16 %v412, %v412
    %v455 = vpack.c.bf16 %v436, %v436
    %v456 = vpack.c.bf16 %v413, %v413
    %v457 = vpack.c.bf16 %v414, %v414
    %v458 = vpack.c.bf16 %v437, %v437
    %v459 = vpack.c.bf16 %v388, %v388
    %v460 = vpack.c.bf16 %v415, %v415
    %v461 = vpack.c.bf16 %v438, %v438
    %v462 = vpack.c.bf16 %v416, %v416
    %v463 = vpack.c.bf16 %v417, %v417
    %v464 = vpack.c.bf16 %v439, %v439
    %v465 = vpack.c.bf16 %v393, %v393
    %v466 = vpack.c.bf16 %v418, %v418
    %v467 = vpack.c.bf16 %v440, %v440
    %v468 = vpack.c.bf16 %v419, %v419
    %v469 = vpack.c.bf16 %v420, %v420
    %v470 = vpack.c.bf16 %v441, %v441
    %v471 = vpack.c.bf16 %v396, %v396
    %v472 = vpack.c.bf16 %v421, %v421
    %v473 = vpack.c.bf16 %v442, %v442
    %v474 = vpack.c.bf16 %v422, %v422
    %v499 = vcombine.low %v451, %v452
    %v501 = vunpack.c.l.s4 1983009808
    %v502 = vunpack.c.0.s8 %v501
    %v503 = vlaneseq
    %v504 = vshrl.u32 %v503, 7
    %v505 = vsub.s32 %v502, %v504
    %v506 = vrot.slane %v499, %v505
    %v508 = vunpack.c.l.s4 1983009808
    %v509 = vunpack.c.0.s8 %v508
    %v510 = vlaneseq
    %v511 = vshrl.u32 %v510, 7
    %v512 = vsub.s32 %v509, %v511
    %v513 = vrot.slane %v453, %v512
    %v514 = vcombine.low %v506, %v513
    %v515 = vcombine.low %v454, %v455
    %v517 = vunpack.c.l.s4 1983009808
    %v518 = vunpack.c.0.s8 %v517
    %v519 = vlaneseq
    %v520 = vshrl.u32 %v519, 7
    %v521 = vsub.s32 %v518, %v520
    %v522 = vrot.slane %v515, %v521
    %v524 = vunpack.c.l.s4 1983009808
    %v525 = vunpack.c.0.s8 %v524
    %v526 = vlaneseq
    %v527 = vshrl.u32 %v526, 7
    %v528 = vsub.s32 %v525, %v527
    %v529 = vrot.slane %v456, %v528
    %v530 = vcombine.low %v522, %v529
    %v531 = vcombine.low %v457, %v458
    %v533 = vunpack.c.l.s4 1983009808
    %v534 = vunpack.c.0.s8 %v533
    %v535 = vlaneseq
    %v536 = vshrl.u32 %v535, 7
    %v537 = vsub.s32 %v534, %v536
    %v538 = vrot.slane %v531, %v537
    %v540 = vunpack.c.l.s4 1983009808
    %v541 = vunpack.c.0.s8 %v540
    %v542 = vlaneseq
    %v543 = vshrl.u32 %v542, 7
    %v544 = vsub.s32 %v541, %v543
    %v545 = vrot.slane %v459, %v544
    %v546 = vcombine.low %v538, %v545
    %v547 = vcombine.low %v460, %v461
    %v549 = vunpack.c.l.s4 1983009808
    %v550 = vunpack.c.0.s8 %v549
    %v551 = vlaneseq
    %v552 = vshrl.u32 %v551, 7
    %v553 = vsub.s32 %v550, %v552
    %v554 = vrot.slane %v547, %v553
    %v556 = vunpack.c.l.s4 1983009808
    %v557 = vunpack.c.0.s8 %v556
    %v558 = vlaneseq
    %v559 = vshrl.u32 %v558, 7
    %v560 = vsub.s32 %v557, %v559
    %v561 = vrot.slane %v462, %v560
    %v562 = vcombine.low %v554, %v561
    %v563 = vcombine.low %v463, %v464
    %v565 = vunpack.c.l.s4 1983009808
    %v566 = vunpack.c.0.s8 %v565
    %v567 = vlaneseq
    %v568 = vshrl.u32 %v567, 7
    %v569 = vsub.s32 %v566, %v568
    %v570 = vrot.slane %v563, %v569
    %v572 = vunpack.c.l.s4 1983009808
    %v573 = vunpack.c.0.s8 %v572
    %v574 = vlaneseq
    %v575 = vshrl.u32 %v574, 7
    %v576 = vsub.s32 %v573, %v575
    %v577 = vrot.slane %v465, %v576
    %v578 = vcombine.low %v570, %v577
    %v579 = vcombine.low %v466, %v467
    %v581 = vunpack.c.l.s4 1983009808
    %v582 = vunpack.c.0.s8 %v581
    %v583 = vlaneseq
    %v584 = vshrl.u32 %v583, 7
    %v585 = vsub.s32 %v582, %v584
    %v586 = vrot.slane %v579, %v585
    %v588 = vunpack.c.l.s4 1983009808
    %v589 = vunpack.c.0.s8 %v588
    %v590 = vlaneseq
    %v591 = vshrl.u32 %v590, 7
    %v592 = vsub.s32 %v589, %v591
    %v593 = vrot.slane %v468, %v592
    %v594 = vcombine.low %v586, %v593
    %v595 = vcombine.low %v469, %v470
    %v597 = vunpack.c.l.s4 1983009808
    %v598 = vunpack.c.0.s8 %v597
    %v599 = vlaneseq
    %v600 = vshrl.u32 %v599, 7
    %v601 = vsub.s32 %v598, %v600
    %v602 = vrot.slane %v595, %v601
    %v604 = vunpack.c.l.s4 1983009808
    %v605 = vunpack.c.0.s8 %v604
    %v606 = vlaneseq
    %v607 = vshrl.u32 %v606, 7
    %v608 = vsub.s32 %v605, %v607
    %v609 = vrot.slane %v471, %v608
    %v610 = vcombine.low %v602, %v609
    %v611 = vcombine.low %v472, %v473
    %v613 = vunpack.c.l.s4 1983009808
    %v614 = vunpack.c.0.s8 %v613
    %v615 = vlaneseq
    %v616 = vshrl.u32 %v615, 7
    %v617 = vsub.s32 %v614, %v616
    %v618 = vrot.slane %v611, %v617
    %v620 = vunpack.c.l.s4 1983009808
    %v621 = vunpack.c.0.s8 %v620
    %v622 = vlaneseq
    %v623 = vshrl.u32 %v622, 7
    %v624 = vsub.s32 %v621, %v623
    %v625 = vrot.slane %v474, %v624
    %v626 = vcombine.low %v618, %v625
    %635 = vst [vmem:[#allocation2] sm:$0x3f] %v514
    %636 = vst [vmem:[#allocation2 + $0x6] sm:$0x3f] %v530
    %637 = vst [vmem:[#allocation2 + $0xc] sm:$0x3f] %v546
    %638 = vst [vmem:[#allocation2 + $0x12] sm:$0x3f] %v562
    %639 = vst [vmem:[#allocation2 + $0x18] sm:$0x3f] %v578
    %640 = vst [vmem:[#allocation2 + $0x1e] sm:$0x3f] %v594
    %641 = vst [vmem:[#allocation2 + $0x24] sm:$0x3f] %v610
    %642 = vst [vmem:[#allocation2 + $0x2a] sm:$0x3f] %v626
    %v643 = vld [vmem:[#allocation2] sm:$0x3f]
    %v644 = vunpack.c.l.bf16 %v643
    %v645 = vunpack.c.h.bf16 %v643
    %v678 = vunpack.c.l.b16 %v94
    %v679 = vunpack.c.h.b16 %v94
    %v680 = vunpack.c.l.b16 %v95
    %v681 = vunpack.c.l.b16 %v96
    %v682 = vunpack.c.h.b16 %v96
    %v683 = vunpack.c.l.b16 %v97
    %v684 = vunpack.c.l.b16 %v98
    %v685 = vunpack.c.h.b16 %v98
    %v686 = vunpack.c.l.b16 %v99
    %v687 = vunpack.c.l.b16 %v100
    %v688 = vunpack.c.h.b16 %v100
    %v689 = vunpack.c.l.b16 %v101
    %v690 = vunpack.c.l.b16 %v102
    %v691 = vunpack.c.h.b16 %v102
    %v692 = vunpack.c.l.b16 %v103
    %v693 = vunpack.c.l.b16 %v104
    %v694 = vunpack.c.h.b16 %v104
    %v695 = vunpack.c.l.b16 %v105
    %v696 = vunpack.c.l.b16 %v106
    %v697 = vunpack.c.h.b16 %v106
    %v698 = vunpack.c.l.b16 %v107
    %v699 = vunpack.c.l.b16 %v108
    %v700 = vunpack.c.h.b16 %v108
    %v701 = vunpack.c.l.b16 %v109
    %v702 = vunpack.c.l.b16 %v110
    %v703 = vunpack.c.h.b16 %v110
    %v704 = vunpack.c.l.b16 %v111
    %v705 = vunpack.c.l.b16 %v112
    %v706 = vunpack.c.h.b16 %v112
    %v707 = vunpack.c.l.b16 %v113
    %v708 = vunpack.c.l.b16 %v114
    %v709 = vunpack.c.h.b16 %v114
    %v710 = vunpack.c.l.b16 %v115
    %v711 = vunpack.c.l.b16 %v116
    %v712 = vunpack.c.h.b16 %v116
    %v713 = vunpack.c.l.b16 %v117
    %v714 = vunpack.c.l.b16 %v118
    %v715 = vunpack.c.h.b16 %v118
    %v716 = vunpack.c.l.b16 %v119
    %v717 = vunpack.c.l.b16 %v120
    %v718 = vunpack.c.h.b16 %v120
    %v719 = vunpack.c.l.b16 %v121
    %v720 = vunpack.c.l.b16 %v122
    %v721 = vunpack.c.h.b16 %v122
    %v722 = vunpack.c.l.b16 %v123
    %v723 = vunpack.c.l.b16 %v124
    %v724 = vunpack.c.h.b16 %v124
    %v725 = vunpack.c.l.b16 %v125
    %v726 = vpack.c.b16 %v681, %v678
    %v727 = vpack.c.b16 %v682, %v679
    %v728 = vpack.c.b16 %v683, %v680
    %v729 = vpack.c.b16 %v687, %v684
    %v730 = vpack.c.b16 %v688, %v685
    %v731 = vpack.c.b16 %v689, %v686
    %v732 = vpack.c.b16 %v693, %v690
    %v733 = vpack.c.b16 %v694, %v691
    %v734 = vpack.c.b16 %v695, %v692
    %v735 = vpack.c.b16 %v699, %v696
    %v736 = vpack.c.b16 %v700, %v697
    %v737 = vpack.c.b16 %v701, %v698
    %v738 = vpack.c.b16 %v705, %v702
    %v739 = vpack.c.b16 %v706, %v703
    %v740 = vpack.c.b16 %v707, %v704
    %v741 = vpack.c.b16 %v711, %v708
    %v742 = vpack.c.b16 %v712, %v709
    %v743 = vpack.c.b16 %v713, %v710
    %v744 = vpack.c.b16 %v717, %v714
    %v745 = vpack.c.b16 %v718, %v715
    %v746 = vpack.c.b16 %v719, %v716
    %v747 = vpack.c.b16 %v723, %v720
    %v748 = vpack.c.b16 %v724, %v721
    %v749 = vpack.c.b16 %v725, %v722
    %774 = vmatprep.subr.bf16.mxu0 %v727
    %775 = vmatpush1.bf16.msra.mxu0 %v726
    %776 = vmatprep.subr.bf16.mxu0 %v730
    %777 = vmatpush1.bf16.msra.mxu0 %v729
    %778 = vmatprep.subr.bf16.mxu0 %v733
    %779 = vmatpush1.bf16.msra.mxu0 %v732
    %780 = vmatprep.subr.bf16.mxu0 %v736
    %781 = vmatpush1.bf16.msra.mxu0 %v735
    %782 = vmatprep.subr.bf16.mxu0 %v739
    %783 = vmatpush1.bf16.msra.mxu0 %v738
    %784 = vmatprep.subr.bf16.mxu0 %v742
    %785 = vmatpush1.bf16.msra.mxu0 %v741
    %786 = vmatprep.subr.bf16.mxu0 %v745
    %787 = vmatpush1.bf16.msra.mxu0 %v744
    %788 = vmatprep.subr.bf16.mxu0 %v748
    %789 = vmatpush1.bf16.msra.mxu0 %v747
    %790 = vmatprep.subr.bf16.mxu0 0
    %791 = vmatpush1.bf16.msra.mxu0 0
    %792 = vmatprep.subr.bf16.mxu0 0
    %793 = vmatpush1.bf16.msra.mxu0 0
    %794 = vmatprep.subr.bf16.mxu0 0
    %795 = vmatpush1.bf16.msra.mxu0 0
    %796 = vmatprep.subr.bf16.mxu0 0
    %797 = vmatpush1.bf16.msra.mxu0 0
    %798 = vmatprep.subr.bf16.mxu0 0
    %799 = vmatpush1.bf16.msra.mxu0 0
    %800 = vmatprep.subr.bf16.mxu0 0
    %801 = vmatpush1.bf16.msra.mxu0 0
    %802 = vmatprep.subr.bf16.mxu0 0
    %803 = vmatpush1.bf16.msra.mxu0 0
    %804 = vmatprep.subr.bf16.mxu0 0
    %805 = vmatpush1.bf16.msra.mxu0 0
    %806 = vmatprep.mubr.bf16.mxu0 0
    %807 = vmatmul.mubr.bf16.gmra.mrb[0].mxu0 0
    %v808 = vpop.f32.mrb[0].mxu0
    %v809 = vadd.f32 0.0, %v808
    %v810 = vpop.f32.mrb[0].mxu0
    %v811 = vadd.f32 0.0, %v810
    %v812 = vpop.f32.mrb[0].mxu0
    %v813 = vpop.f32.mrb[0].mxu0
    %814 = vdwg.mxu0
    %815 = vmatprep.subr.bf16.mxu0 0
    %816 = vmatpush1.bf16.msra.mxu0 %v728
    %817 = vmatprep.subr.bf16.mxu0 0
    %818 = vmatpush1.bf16.msra.mxu0 %v731
    %819 = vmatprep.subr.bf16.mxu0 0
    %820 = vmatpush1.bf16.msra.mxu0 %v734
    %821 = vmatprep.subr.bf16.mxu0 0
    %822 = vmatpush1.bf16.msra.mxu0 %v737
    %823 = vmatprep.subr.bf16.mxu0 0
    %824 = vmatpush1.bf16.msra.mxu0 %v740
    %825 = vmatprep.subr.bf16.mxu0 0
    %826 = vmatpush1.bf16.msra.mxu0 %v743
    %827 = vmatprep.subr.bf16.mxu0 0
    %828 = vmatpush1.bf16.msra.mxu0 %v746
    %829 = vmatprep.subr.bf16.mxu0 0
    %830 = vmatpush1.bf16.msra.mxu0 %v749
    %831 = vmatprep.subr.bf16.mxu0 0
    %832 = vmatpush1.bf16.msra.mxu0 0
    %833 = vmatprep.subr.bf16.mxu0 0
    %834 = vmatpush1.bf16.msra.mxu0 0
    %835 = vmatprep.subr.bf16.mxu0 0
    %836 = vmatpush1.bf16.msra.mxu0 0
    %837 = vmatprep.subr.bf16.mxu0 0
    %838 = vmatpush1.bf16.msra.mxu0 0
    %839 = vmatprep.subr.bf16.mxu0 0
    %840 = vmatpush1.bf16.msra.mxu0 0
    %841 = vmatprep.subr.bf16.mxu0 0
    %842 = vmatpush1.bf16.msra.mxu0 0
    %843 = vmatprep.subr.bf16.mxu0 0
    %844 = vmatpush1.bf16.msra.mxu0 0
    %845 = vmatprep.subr.bf16.mxu0 0
    %846 = vmatpush1.bf16.msra.mxu0 0
    %847 = vmatprep.mubr.bf16.mxu0 0
    %848 = vmatmul.mubr.bf16.gmra.mrb[0].mxu0 0
    %v849 = vpop.f32.mrb[0].mxu0
    %v850 = vadd.f32 0.0, %v849
    %v851 = vpop.f32.mrb[0].mxu0
    %v852 = vpop.f32.mrb[0].mxu0
    %v853 = vpop.f32.mrb[0].mxu0
    %854 = vdwg.mxu0
    %v857 = vcombine.low %v809, %v811
    %v859 = vadd.f32 %v644, %v857
    %v860 = vmul.f32 %v859, 0.5
    %v861 = vtanh.pop %v860
    %v862 = vmul.f32 %v861, 0.5
    %v863 = vadd.f32 %v862, 0.5
    %v865 = vlaneseq
    %v866 = vshrl.u32 %v865, 7
    %v867 = vsub.s32 0, %v866
    %v868 = vrot.slane %v126, %v867
    %v870 = vadd.f32 %v850, %v868
    %v871 = vmul.f32 %v863, %v870
    %v872 = vadd.f32 %v645, %v871
    %v873 = vtanh.pop %v872
    %v874 = vsub.f32 0.0, %v873
    %v876 = vrot.slane %v863, 4
    %v878 = vmul.f32 %v876, %v874
    %v879 = vadd.f32 %v873, %v878
    %s880 = scalar_lea.vmem [#allocation2], 6
    %v881 = vld [vmem:[%s880] sm:$0x3f]
    %v882 = vunpack.c.l.bf16 %v881
    %v883 = vunpack.c.h.bf16 %v881
    %v884 = vpack.c.bf16 %v879, %v879
    %885 = vmatprep.subr.bf16.mxu0 %v727
    %886 = vmatpush1.bf16.msra.mxu0 %v726
    %887 = vmatprep.subr.bf16.mxu0 %v730
    %888 = vmatpush1.bf16.msra.mxu0 %v729
    %889 = vmatprep.subr.bf16.mxu0 %v733
    %890 = vmatpush1.bf16.msra.mxu0 %v732
    %891 = vmatprep.subr.bf16.mxu0 %v736
    %892 = vmatpush1.bf16.msra.mxu0 %v735
    %893 = vmatprep.subr.bf16.mxu0 %v739
    %894 = vmatpush1.bf16.msra.mxu0 %v738
    %895 = vmatprep.subr.bf16.mxu0 %v742
    %896 = vmatpush1.bf16.msra.mxu0 %v741
    %897 = vmatprep.subr.bf16.mxu0 %v745
    %898 = vmatpush1.bf16.msra.mxu0 %v744
    %899 = vmatprep.subr.bf16.mxu0 %v748
    %900 = vmatpush1.bf16.msra.mxu0 %v747
    %901 = vmatprep.subr.bf16.mxu0 0
    %902 = vmatpush1.bf16.msra.mxu0 0
    %903 = vmatprep.subr.bf16.mxu0 0
    %904 = vmatpush1.bf16.msra.mxu0 0
    %905 = vmatprep.subr.bf16.mxu0 0
    %906 = vmatpush1.bf16.msra.mxu0 0
    %907 = vmatprep.subr.bf16.mxu0 0
    %908 = vmatpush1.bf16.msra.mxu0 0
    %909 = vmatprep.subr.bf16.mxu0 0
    %910 = vmatpush1.bf16.msra.mxu0 0
    %911 = vmatprep.subr.bf16.mxu0 0
    %912 = vmatpush1.bf16.msra.mxu0 0
    %913 = vmatprep.subr.bf16.mxu0 0
    %914 = vmatpush1.bf16.msra.mxu0 0
    %915 = vmatprep.subr.bf16.mxu0 0
    %916 = vmatpush1.bf16.msra.mxu0 0
    %917 = vmatprep.mubr.bf16.mxu0 0
    %918 = vmatmul.mubr.bf16.gmra.mrb[0].mxu0 %v884
    %v919 = vpop.f32.mrb[0].mxu0
    %v920 = vadd.f32 0.0, %v919
    %v921 = vpop.f32.mrb[0].mxu0
    %v922 = vadd.f32 0.0, %v921
    %v923 = vpop.f32.mrb[0].mxu0
    %v924 = vpop.f32.mrb[0].mxu0
    %925 = vdwg.mxu0
    %926 = vmatprep.subr.bf16.mxu0 0
    %927 = vmatpush1.bf16.msra.mxu0 %v728
    %928 = vmatprep.subr.bf16.mxu0 0
    %929 = vmatpush1.bf16.msra.mxu0 %v731
    %930 = vmatprep.subr.bf16.mxu0 0
    %931 = vmatpush1.bf16.msra.mxu0 %v734
    %932 = vmatprep.subr.bf16.mxu0 0
    %933 = vmatpush1.bf16.msra.mxu0 %v737
    %934 = vmatprep.subr.bf16.mxu0 0
    %935 = vmatpush1.bf16.msra.mxu0 %v740
    %936 = vmatprep.subr.bf16.mxu0 0
    %937 = vmatpush1.bf16.msra.mxu0 %v743
    %938 = vmatprep.subr.bf16.mxu0 0
    %939 = vmatpush1.bf16.msra.mxu0 %v746
    %940 = vmatprep.subr.bf16.mxu0 0
    %941 = vmatpush1.bf16.msra.mxu0 %v749
    %942 = vmatprep.subr.bf16.mxu0 0
    %943 = vmatpush1.bf16.msra.mxu0 0
    %944 = vmatprep.subr.bf16.mxu0 0
    %945 = vmatpush1.bf16.msra.mxu0 0
    %946 = vmatprep.subr.bf16.mxu0 0
    %947 = vmatpush1.bf16.msra.mxu0 0
    %948 = vmatprep.subr.bf16.mxu0 0
    %949 = vmatpush1.bf16.msra.mxu0 0
    %950 = vmatprep.subr.bf16.mxu0 0
    %951 = vmatpush1.bf16.msra.mxu0 0
    %952 = vmatprep.subr.bf16.mxu0 0
    %953 = vmatpush1.bf16.msra.mxu0 0
    %954 = vmatprep.subr.bf16.mxu0 0
    %955 = vmatpush1.bf16.msra.mxu0 0
    %956 = vmatprep.subr.bf16.mxu0 0
    %957 = vmatpush1.bf16.msra.mxu0 0
    %958 = vmatprep.mubr.bf16.mxu0 0
    %959 = vmatmul.mubr.bf16.gmra.mrb[0].mxu0 %v884
    %v960 = vpop.f32.mrb[0].mxu0
    %v961 = vadd.f32 0.0, %v960
    %v962 = vpop.f32.mrb[0].mxu0
    %v963 = vpop.f32.mrb[0].mxu0
    %v964 = vpop.f32.mrb[0].mxu0
    %965 = vdwg.mxu0
    %v968 = vcombine.low %v920, %v922
    %v970 = vadd.f32 %v882, %v968
    %v971 = vmul.f32 %v970, 0.5
    %v972 = vtanh.pop %v971
    %v973 = vmul.f32 %v972, 0.5
    %v974 = vadd.f32 %v973, 0.5
    %v975 = vadd.f32 %v961, %v868
    %v976 = vmul.f32 %v974, %v975
    %v977 = vadd.f32 %v883, %v976
    %v978 = vtanh.pop %v977
    %v979 = vsub.f32 %v879, %v978
    %v981 = vrot.slane %v974, 4
    %v983 = vmul.f32 %v981, %v979
    %v984 = vadd.f32 %v978, %v983
    %s985 = scalar_lea.vmem [#allocation2], 12
    %v986 = vld [vmem:[%s985] sm:$0x3f]
    %v987 = vunpack.c.l.bf16 %v986
    %v988 = vunpack.c.h.bf16 %v986
    %v989 = vpack.c.bf16 %v984, %v984
    %990 = vmatprep.subr.bf16.mxu0 %v727
    %991 = vmatpush1.bf16.msra.mxu0 %v726
    %992 = vmatprep.subr.bf16.mxu0 %v730
    %993 = vmatpush1.bf16.msra.mxu0 %v729
    %994 = vmatprep.subr.bf16.mxu0 %v733
    %995 = vmatpush1.bf16.msra.mxu0 %v732
    %996 = vmatprep.subr.bf16.mxu0 %v736
    %997 = vmatpush1.bf16.msra.mxu0 %v735
    %998 = vmatprep.subr.bf16.mxu0 %v739
    %999 = vmatpush1.bf16.msra.mxu0 %v738
    %1000 = vmatprep.subr.bf16.mxu0 %v742
    %1001 = vmatpush1.bf16.msra.mxu0 %v741
    %1002 = vmatprep.subr.bf16.mxu0 %v745
    %1003 = vmatpush1.bf16.msra.mxu0 %v744
    %1004 = vmatprep.subr.bf16.mxu0 %v748
    %1005 = vmatpush1.bf16.msra.mxu0 %v747
    %1006 = vmatprep.subr.bf16.mxu0 0
    %1007 = vmatpush1.bf16.msra.mxu0 0
    %1008 = vmatprep.subr.bf16.mxu0 0
    %1009 = vmatpush1.bf16.msra.mxu0 0
    %1010 = vmatprep.subr.bf16.mxu0 0
    %1011 = vmatpush1.bf16.msra.mxu0 0
    %1012 = vmatprep.subr.bf16.mxu0 0
    %1013 = vmatpush1.bf16.msra.mxu0 0
    %1014 = vmatprep.subr.bf16.mxu0 0
    %1015 = vmatpush1.bf16.msra.mxu0 0
    %1016 = vmatprep.subr.bf16.mxu0 0
    %1017 = vmatpush1.bf16.msra.mxu0 0
    %1018 = vmatprep.subr.bf16.mxu0 0
    %1019 = vmatpush1.bf16.msra.mxu0 0
    %1020 = vmatprep.subr.bf16.mxu0 0
    %1021 = vmatpush1.bf16.msra.mxu0 0
    %1022 = vmatprep.mubr.bf16.mxu0 0
    %1023 = vmatmul.mubr.bf16.gmra.mrb[0].mxu0 %v989
    %v1024 = vpop.f32.mrb[0].mxu0
    %v1025 = vadd.f32 0.0, %v1024
    %v1026 = vpop.f32.mrb[0].mxu0
    %v1027 = vadd.f32 0.0, %v1026
    %v1028 = vpop.f32.mrb[0].mxu0
    %v1029 = vpop.f32.mrb[0].mxu0
    %1030 = vdwg.mxu0
    %1031 = vmatprep.subr.bf16.mxu0 0
    %1032 = vmatpush1.bf16.msra.mxu0 %v728
    %1033 = vmatprep.subr.bf16.mxu0 0
    %1034 = vmatpush1.bf16.msra.mxu0 %v731
    %1035 = vmatprep.subr.bf16.mxu0 0
    %1036 = vmatpush1.bf16.msra.mxu0 %v734
    %1037 = vmatprep.subr.bf16.mxu0 0
    %1038 = vmatpush1.bf16.msra.mxu0 %v737
    %1039 = vmatprep.subr.bf16.mxu0 0
    %1040 = vmatpush1.bf16.msra.mxu0 %v740
    %1041 = vmatprep.subr.bf16.mxu0 0
    %1042 = vmatpush1.bf16.msra.mxu0 %v743
    %1043 = vmatprep.subr.bf16.mxu0 0
    %1044 = vmatpush1.bf16.msra.mxu0 %v746
    %1045 = vmatprep.subr.bf16.mxu0 0
    %1046 = vmatpush1.bf16.msra.mxu0 %v749
    %1047 = vmatprep.subr.bf16.mxu0 0
    %1048 = vmatpush1.bf16.msra.mxu0 0
    %1049 = vmatprep.subr.bf16.mxu0 0
    %1050 = vmatpush1.bf16.msra.mxu0 0
    %1051 = vmatprep.subr.bf16.mxu0 0
    %1052 = vmatpush1.bf16.msra.mxu0 0
    %1053 = vmatprep.subr.bf16.mxu0 0
    %1054 = vmatpush1.bf16.msra.mxu0 0
    %1055 = vmatprep.subr.bf16.mxu0 0
    %1056 = vmatpush1.bf16.msra.mxu0 0
    %1057 = vmatprep.subr.bf16.mxu0 0
    %1058 = vmatpush1.bf16.msra.mxu0 0
    %1059 = vmatprep.subr.bf16.mxu0 0
    %1060 = vmatpush1.bf16.msra.mxu0 0
    %1061 = vmatprep.subr.bf16.mxu0 0
    %1062 = vmatpush1.bf16.msra.mxu0 0
    %1063 = vmatprep.mubr.bf16.mxu0 0
    %1064 = vmatmul.mubr.bf16.gmra.mrb[0].mxu0 %v989
    %v1065 = vpop.f32.mrb[0].mxu0
    %v1066 = vadd.f32 0.0, %v1065
    %v1067 = vpop.f32.mrb[0].mxu0
    %v1068 = vpop.f32.mrb[0].mxu0
    %v1069 = vpop.f32.mrb[0].mxu0
    %1070 = vdwg.mxu0
    %v1073 = vcombine.low %v1025, %v1027
    %v1075 = vadd.f32 %v987, %v1073
    %v1076 = vmul.f32 %v1075, 0.5
    %v1077 = vtanh.pop %v1076
    %v1078 = vmul.f32 %v1077, 0.5
    %v1079 = vadd.f32 %v1078, 0.5
    %v1080 = vadd.f32 %v1066, %v868
    %v1081 = vmul.f32 %v1079, %v1080
    %v1082 = vadd.f32 %v988, %v1081
    %v1083 = vtanh.pop %v1082
    %v1084 = vsub.f32 %v984, %v1083
    %v1086 = vrot.slane %v1079, 4
    %v1088 = vmul.f32 %v1086, %v1084
    %v1089 = vadd.f32 %v1083, %v1088
    %s1090 = scalar_lea.vmem [#allocation2], 18
    %v1091 = vld [vmem:[%s1090] sm:$0x3f]
    %v1092 = vunpack.c.l.bf16 %v1091
    %v1093 = vunpack.c.h.bf16 %v1091
    %v1094 = vpack.c.bf16 %v1089, %v1089
    %1095 = vmatprep.subr.bf16.mxu0 %v727
    %1096 = vmatpush1.bf16.msra.mxu0 %v726
    %1097 = vmatprep.subr.bf16.mxu0 %v730
    %1098 = vmatpush1.bf16.msra.mxu0 %v729
    %1099 = vmatprep.subr.bf16.mxu0 %v733
    %1100 = vmatpush1.bf16.msra.mxu0 %v732
    %1101 = vmatprep.subr.bf16.mxu0 %v736
    %1102 = vmatpush1.bf16.msra.mxu0 %v735
    %1103 = vmatprep.subr.bf16.mxu0 %v739
    %1104 = vmatpush1.bf16.msra.mxu0 %v738
    %1105 = vmatprep.subr.bf16.mxu0 %v742
    %1106 = vmatpush1.bf16.msra.mxu0 %v741
    %1107 = vmatprep.subr.bf16.mxu0 %v745
    %1108 = vmatpush1.bf16.msra.mxu0 %v744
    %1109 = vmatprep.subr.bf16.mxu0 %v748
    %1110 = vmatpush1.bf16.msra.mxu0 %v747
    %1111 = vmatprep.subr.bf16.mxu0 0
    %1112 = vmatpush1.bf16.msra.mxu0 0
    %1113 = vmatprep.subr.bf16.mxu0 0
    %1114 = vmatpush1.bf16.msra.mxu0 0
    %1115 = vmatprep.subr.bf16.mxu0 0
    %1116 = vmatpush1.bf16.msra.mxu0 0
    %1117 = vmatprep.subr.bf16.mxu0 0
    %1118 = vmatpush1.bf16.msra.mxu0 0
    %1119 = vmatprep.subr.bf16.mxu0 0
    %1120 = vmatpush1.bf16.msra.mxu0 0
    %1121 = vmatprep.subr.bf16.mxu0 0
    %1122 = vmatpush1.bf16.msra.mxu0 0
    %1123 = vmatprep.subr.bf16.mxu0 0
    %1124 = vmatpush1.bf16.msra.mxu0 0
    %1125 = vmatprep.subr.bf16.mxu0 0
    %1126 = vmatpush1.bf16.msra.mxu0 0
    %1127 = vmatprep.mubr.bf16.mxu0 0
    %1128 = vmatmul.mubr.bf16.gmra.mrb[0].mxu0 %v1094
    %v1129 = vpop.f32.mrb[0].mxu0
    %v1130 = vadd.f32 0.0, %v1129
    %v1131 = vpop.f32.mrb[0].mxu0
    %v1132 = vadd.f32 0.0, %v1131
    %v1133 = vpop.f32.mrb[0].mxu0
    %v1134 = vpop.f32.mrb[0].mxu0
    %1135 = vdwg.mxu0
    %1136 = vmatprep.subr.bf16.mxu0 0
    %1137 = vmatpush1.bf16.msra.mxu0 %v728
    %1138 = vmatprep.subr.bf16.mxu0 0
    %1139 = vmatpush1.bf16.msra.mxu0 %v731
    %1140 = vmatprep.subr.bf16.mxu0 0
    %1141 = vmatpush1.bf16.msra.mxu0 %v734
    %1142 = vmatprep.subr.bf16.mxu0 0
    %1143 = vmatpush1.bf16.msra.mxu0 %v737
    %1144 = vmatprep.subr.bf16.mxu0 0
    %1145 = vmatpush1.bf16.msra.mxu0 %v740
    %1146 = vmatprep.subr.bf16.mxu0 0
    %1147 = vmatpush1.bf16.msra.mxu0 %v743
    %1148 = vmatprep.subr.bf16.mxu0 0
    %1149 = vmatpush1.bf16.msra.mxu0 %v746
    %1150 = vmatprep.subr.bf16.mxu0 0
    %1151 = vmatpush1.bf16.msra.mxu0 %v749
    %1152 = vmatprep.subr.bf16.mxu0 0
    %1153 = vmatpush1.bf16.msra.mxu0 0
    %1154 = vmatprep.subr.bf16.mxu0 0
    %1155 = vmatpush1.bf16.msra.mxu0 0
    %1156 = vmatprep.subr.bf16.mxu0 0
    %1157 = vmatpush1.bf16.msra.mxu0 0
    %1158 = vmatprep.subr.bf16.mxu0 0
    %1159 = vmatpush1.bf16.msra.mxu0 0
    %1160 = vmatprep.subr.bf16.mxu0 0
    %1161 = vmatpush1.bf16.msra.mxu0 0
    %1162 = vmatprep.subr.bf16.mxu0 0
    %1163 = vmatpush1.bf16.msra.mxu0 0
    %1164 = vmatprep.subr.bf16.mxu0 0
    %1165 = vmatpush1.bf16.msra.mxu0 0
    %1166 = vmatprep.subr.bf16.mxu0 0
    %1167 = vmatpush1.bf16.msra.mxu0 0
    %1168 = vmatprep.mubr.bf16.mxu0 0
    %1169 = vmatmul.mubr.bf16.gmra.mrb[0].mxu0 %v1094
    %v1170 = vpop.f32.mrb[0].mxu0
    %v1171 = vadd.f32 0.0, %v1170
    %v1172 = vpop.f32.mrb[0].mxu0
    %v1173 = vpop.f32.mrb[0].mxu0
    %v1174 = vpop.f32.mrb[0].mxu0
    %1175 = vdwg.mxu0
    %v1178 = vcombine.low %v1130, %v1132
    %v1180 = vadd.f32 %v1092, %v1178
    %v1181 = vmul.f32 %v1180, 0.5
    %v1182 = vtanh.pop %v1181
    %v1183 = vmul.f32 %v1182, 0.5
    %v1184 = vadd.f32 %v1183, 0.5
    %v1185 = vadd.f32 %v1171, %v868
    %v1186 = vmul.f32 %v1184, %v1185
    %v1187 = vadd.f32 %v1093, %v1186
    %v1188 = vtanh.pop %v1187
    %v1189 = vsub.f32 %v1089, %v1188
    %v1191 = vrot.slane %v1184, 4
    %v1193 = vmul.f32 %v1191, %v1189
    %v1194 = vadd.f32 %v1188, %v1193
    %s1195 = scalar_lea.vmem [#allocation2], 24
    %v1196 = vld [vmem:[%s1195] sm:$0x3f]
    %v1197 = vunpack.c.l.bf16 %v1196
    %v1198 = vunpack.c.h.bf16 %v1196
    %v1199 = vpack.c.bf16 %v1194, %v1194
    %1200 = vmatprep.subr.bf16.mxu0 %v727
    %1201 = vmatpush1.bf16.msra.mxu0 %v726
    %1202 = vmatprep.subr.bf16.mxu0 %v730
    %1203 = vmatpush1.bf16.msra.mxu0 %v729
    %1204 = vmatprep.subr.bf16.mxu0 %v733
    %1205 = vmatpush1.bf16.msra.mxu0 %v732
    %1206 = vmatprep.subr.bf16.mxu0 %v736
    %1207 = vmatpush1.bf16.msra.mxu0 %v735
    %1208 = vmatprep.subr.bf16.mxu0 %v739
    %1209 = vmatpush1.bf16.msra.mxu0 %v738
    %1210 = vmatprep.subr.bf16.mxu0 %v742
    %1211 = vmatpush1.bf16.msra.mxu0 %v741
    %1212 = vmatprep.subr.bf16.mxu0 %v745
    %1213 = vmatpush1.bf16.msra.mxu0 %v744
    %1214 = vmatprep.subr.bf16.mxu0 %v748
    %1215 = vmatpush1.bf16.msra.mxu0 %v747
    %1216 = vmatprep.subr.bf16.mxu0 0
    %1217 = vmatpush1.bf16.msra.mxu0 0
    %1218 = vmatprep.subr.bf16.mxu0 0
    %1219 = vmatpush1.bf16.msra.mxu0 0
    %1220 = vmatprep.subr.bf16.mxu0 0
    %1221 = vmatpush1.bf16.msra.mxu0 0
    %1222 = vmatprep.subr.bf16.mxu0 0
    %1223 = vmatpush1.bf16.msra.mxu0 0
    %1224 = vmatprep.subr.bf16.mxu0 0
    %1225 = vmatpush1.bf16.msra.mxu0 0
    %1226 = vmatprep.subr.bf16.mxu0 0
    %1227 = vmatpush1.bf16.msra.mxu0 0
    %1228 = vmatprep.subr.bf16.mxu0 0
    %1229 = vmatpush1.bf16.msra.mxu0 0
    %1230 = vmatprep.subr.bf16.mxu0 0
    %1231 = vmatpush1.bf16.msra.mxu0 0
    %1232 = vmatprep.mubr.bf16.mxu0 0
    %1233 = vmatmul.mubr.bf16.gmra.mrb[0].mxu0 %v1199
    %v1234 = vpop.f32.mrb[0].mxu0
    %v1235 = vadd.f32 0.0, %v1234
    %v1236 = vpop.f32.mrb[0].mxu0
    %v1237 = vadd.f32 0.0, %v1236
    %v1238 = vpop.f32.mrb[0].mxu0
    %v1239 = vpop.f32.mrb[0].mxu0
    %1240 = vdwg.mxu0
    %1241 = vmatprep.subr.bf16.mxu0 0
    %1242 = vmatpush1.bf16.msra.mxu0 %v728
    %1243 = vmatprep.subr.bf16.mxu0 0
    %1244 = vmatpush1.bf16.msra.mxu0 %v731
    %1245 = vmatprep.subr.bf16.mxu0 0
    %1246 = vmatpush1.bf16.msra.mxu0 %v734
    %1247 = vmatprep.subr.bf16.mxu0 0
    %1248 = vmatpush1.bf16.msra.mxu0 %v737
    %1249 = vmatprep.subr.bf16.mxu0 0
    %1250 = vmatpush1.bf16.msra.mxu0 %v740
    %1251 = vmatprep.subr.bf16.mxu0 0
    %1252 = vmatpush1.bf16.msra.mxu0 %v743
    %1253 = vmatprep.subr.bf16.mxu0 0
    %1254 = vmatpush1.bf16.msra.mxu0 %v746
    %1255 = vmatprep.subr.bf16.mxu0 0
    %1256 = vmatpush1.bf16.msra.mxu0 %v749
    %1257 = vmatprep.subr.bf16.mxu0 0
    %1258 = vmatpush1.bf16.msra.mxu0 0
    %1259 = vmatprep.subr.bf16.mxu0 0
    %1260 = vmatpush1.bf16.msra.mxu0 0
    %1261 = vmatprep.subr.bf16.mxu0 0
    %1262 = vmatpush1.bf16.msra.mxu0 0
    %1263 = vmatprep.subr.bf16.mxu0 0
    %1264 = vmatpush1.bf16.msra.mxu0 0
    %1265 = vmatprep.subr.bf16.mxu0 0
    %1266 = vmatpush1.bf16.msra.mxu0 0
    %1267 = vmatprep.subr.bf16.mxu0 0
    %1268 = vmatpush1.bf16.msra.mxu0 0
    %1269 = vmatprep.subr.bf16.mxu0 0
    %1270 = vmatpush1.bf16.msra.mxu0 0
    %1271 = vmatprep.subr.bf16.mxu0 0
    %1272 = vmatpush1.bf16.msra.mxu0 0
    %1273 = vmatprep.mubr.bf16.mxu0 0
    %1274 = vmatmul.mubr.bf16.gmra.mrb[0].mxu0 %v1199
    %v1275 = vpop.f32.mrb[0].mxu0
    %v1276 = vadd.f32 0.0, %v1275
    %v1277 = vpop.f32.mrb[0].mxu0
    %v1278 = vpop.f32.mrb[0].mxu0
    %v1279 = vpop.f32.mrb[0].mxu0
    %1280 = vdwg.mxu0
    %v1283 = vcombine.low %v1235, %v1237
    %v1285 = vadd.f32 %v1197, %v1283
    %v1286 = vmul.f32 %v1285, 0.5
    %v1287 = vtanh.pop %v1286
    %v1288 = vmul.f32 %v1287, 0.5
    %v1289 = vadd.f32 %v1288, 0.5
    %v1290 = vadd.f32 %v1276, %v868
    %v1291 = vmul.f32 %v1289, %v1290
    %v1292 = vadd.f32 %v1198, %v1291
    %v1293 = vtanh.pop %v1292
    %v1294 = vsub.f32 %v1194, %v1293
    %v1296 = vrot.slane %v1289, 4
    %v1298 = vmul.f32 %v1296, %v1294
    %v1299 = vadd.f32 %v1293, %v1298
    %s1300 = scalar_lea.vmem [#allocation2], 30
    %v1301 = vld [vmem:[%s1300] sm:$0x3f]
    %v1302 = vunpack.c.l.bf16 %v1301
    %v1303 = vunpack.c.h.bf16 %v1301
    %v1304 = vpack.c.bf16 %v1299, %v1299
    %1305 = vmatprep.subr.bf16.mxu0 %v727
    %1306 = vmatpush1.bf16.msra.mxu0 %v726
    %1307 = vmatprep.subr.bf16.mxu0 %v730
    %1308 = vmatpush1.bf16.msra.mxu0 %v729
    %1309 = vmatprep.subr.bf16.mxu0 %v733
    %1310 = vmatpush1.bf16.msra.mxu0 %v732
    %1311 = vmatprep.subr.bf16.mxu0 %v736
    %1312 = vmatpush1.bf16.msra.mxu0 %v735
    %1313 = vmatprep.subr.bf16.mxu0 %v739
    %1314 = vmatpush1.bf16.msra.mxu0 %v738
    %1315 = vmatprep.subr.bf16.mxu0 %v742
    %1316 = vmatpush1.bf16.msra.mxu0 %v741
    %1317 = vmatprep.subr.bf16.mxu0 %v745
    %1318 = vmatpush1.bf16.msra.mxu0 %v744
    %1319 = vmatprep.subr.bf16.mxu0 %v748
    %1320 = vmatpush1.bf16.msra.mxu0 %v747
    %1321 = vmatprep.subr.bf16.mxu0 0
    %1322 = vmatpush1.bf16.msra.mxu0 0
    %1323 = vmatprep.subr.bf16.mxu0 0
    %1324 = vmatpush1.bf16.msra.mxu0 0
    %1325 = vmatprep.subr.bf16.mxu0 0
    %1326 = vmatpush1.bf16.msra.mxu0 0
    %1327 = vmatprep.subr.bf16.mxu0 0
    %1328 = vmatpush1.bf16.msra.mxu0 0
    %1329 = vmatprep.subr.bf16.mxu0 0
    %1330 = vmatpush1.bf16.msra.mxu0 0
    %1331 = vmatprep.subr.bf16.mxu0 0
    %1332 = vmatpush1.bf16.msra.mxu0 0
    %1333 = vmatprep.subr.bf16.mxu0 0
    %1334 = vmatpush1.bf16.msra.mxu0 0
    %1335 = vmatprep.subr.bf16.mxu0 0
    %1336 = vmatpush1.bf16.msra.mxu0 0
    %1337 = vmatprep.mubr.bf16.mxu0 0
    %1338 = vmatmul.mubr.bf16.gmra.mrb[0].mxu0 %v1304
    %v1339 = vpop.f32.mrb[0].mxu0
    %v1340 = vadd.f32 0.0, %v1339
    %v1341 = vpop.f32.mrb[0].mxu0
    %v1342 = vadd.f32 0.0, %v1341
    %v1343 = vpop.f32.mrb[0].mxu0
    %v1344 = vpop.f32.mrb[0].mxu0
    %1345 = vdwg.mxu0
    %1346 = vmatprep.subr.bf16.mxu0 0
    %1347 = vmatpush1.bf16.msra.mxu0 %v728
    %1348 = vmatprep.subr.bf16.mxu0 0
    %1349 = vmatpush1.bf16.msra.mxu0 %v731
    %1350 = vmatprep.subr.bf16.mxu0 0
    %1351 = vmatpush1.bf16.msra.mxu0 %v734
    %1352 = vmatprep.subr.bf16.mxu0 0
    %1353 = vmatpush1.bf16.msra.mxu0 %v737
    %1354 = vmatprep.subr.bf16.mxu0 0
    %1355 = vmatpush1.bf16.msra.mxu0 %v740
    %1356 = vmatprep.subr.bf16.mxu0 0
    %1357 = vmatpush1.bf16.msra.mxu0 %v743
    %1358 = vmatprep.subr.bf16.mxu0 0
    %1359 = vmatpush1.bf16.msra.mxu0 %v746
    %1360 = vmatprep.subr.bf16.mxu0 0
    %1361 = vmatpush1.bf16.msra.mxu0 %v749
    %1362 = vmatprep.subr.bf16.mxu0 0
    %1363 = vmatpush1.bf16.msra.mxu0 0
    %1364 = vmatprep.subr.bf16.mxu0 0
    %1365 = vmatpush1.bf16.msra.mxu0 0
    %1366 = vmatprep.subr.bf16.mxu0 0
    %1367 = vmatpush1.bf16.msra.mxu0 0
    %1368 = vmatprep.subr.bf16.mxu0 0
    %1369 = vmatpush1.bf16.msra.mxu0 0
    %1370 = vmatprep.subr.bf16.mxu0 0
    %1371 = vmatpush1.bf16.msra.mxu0 0
    %1372 = vmatprep.subr.bf16.mxu0 0
    %1373 = vmatpush1.bf16.msra.mxu0 0
    %1374 = vmatprep.subr.bf16.mxu0 0
    %1375 = vmatpush1.bf16.msra.mxu0 0
    %1376 = vmatprep.subr.bf16.mxu0 0
    %1377 = vmatpush1.bf16.msra.mxu0 0
    %1378 = vmatprep.mubr.bf16.mxu0 0
    %1379 = vmatmul.mubr.bf16.gmra.mrb[0].mxu0 %v1304
    %v1380 = vpop.f32.mrb[0].mxu0
    %v1381 = vadd.f32 0.0, %v1380
    %v1382 = vpop.f32.mrb[0].mxu0
    %v1383 = vpop.f32.mrb[0].mxu0
    %v1384 = vpop.f32.mrb[0].mxu0
    %1385 = vdwg.mxu0
    %v1388 = vcombine.low %v1340, %v1342
    %v1390 = vadd.f32 %v1302, %v1388
    %v1391 = vmul.f32 %v1390, 0.5
    %v1392 = vtanh.pop %v1391
    %v1393 = vmul.f32 %v1392, 0.5
    %v1394 = vadd.f32 %v1393, 0.5
    %v1395 = vadd.f32 %v1381, %v868
    %v1396 = vmul.f32 %v1394, %v1395
    %v1397 = vadd.f32 %v1303, %v1396
    %v1398 = vtanh.pop %v1397
    %v1399 = vsub.f32 %v1299, %v1398
    %v1401 = vrot.slane %v1394, 4
    %v1403 = vmul.f32 %v1401, %v1399
    %v1404 = vadd.f32 %v1398, %v1403
    %s1405 = scalar_lea.vmem [#allocation2], 36
    %v1406 = vld [vmem:[%s1405] sm:$0x3f]
    %v1407 = vunpack.c.l.bf16 %v1406
    %v1408 = vunpack.c.h.bf16 %v1406
    %v1409 = vpack.c.bf16 %v1404, %v1404
    %1410 = vmatprep.subr.bf16.mxu0 %v727
    %1411 = vmatpush1.bf16.msra.mxu0 %v726
    %1412 = vmatprep.subr.bf16.mxu0 %v730
    %1413 = vmatpush1.bf16.msra.mxu0 %v729
    %1414 = vmatprep.subr.bf16.mxu0 %v733
    %1415 = vmatpush1.bf16.msra.mxu0 %v732
    %1416 = vmatprep.subr.bf16.mxu0 %v736
    %1417 = vmatpush1.bf16.msra.mxu0 %v735
    %1418 = vmatprep.subr.bf16.mxu0 %v739
    %1419 = vmatpush1.bf16.msra.mxu0 %v738
    %1420 = vmatprep.subr.bf16.mxu0 %v742
    %1421 = vmatpush1.bf16.msra.mxu0 %v741
    %1422 = vmatprep.subr.bf16.mxu0 %v745
    %1423 = vmatpush1.bf16.msra.mxu0 %v744
    %1424 = vmatprep.subr.bf16.mxu0 %v748
    %1425 = vmatpush1.bf16.msra.mxu0 %v747
    %1426 = vmatprep.subr.bf16.mxu0 0
    %1427 = vmatpush1.bf16.msra.mxu0 0
    %1428 = vmatprep.subr.bf16.mxu0 0
    %1429 = vmatpush1.bf16.msra.mxu0 0
    %1430 = vmatprep.subr.bf16.mxu0 0
    %1431 = vmatpush1.bf16.msra.mxu0 0
    %1432 = vmatprep.subr.bf16.mxu0 0
    %1433 = vmatpush1.bf16.msra.mxu0 0
    %1434 = vmatprep.subr.bf16.mxu0 0
    %1435 = vmatpush1.bf16.msra.mxu0 0
    %1436 = vmatprep.subr.bf16.mxu0 0
    %1437 = vmatpush1.bf16.msra.mxu0 0
    %1438 = vmatprep.subr.bf16.mxu0 0
    %1439 = vmatpush1.bf16.msra.mxu0 0
    %1440 = vmatprep.subr.bf16.mxu0 0
    %1441 = vmatpush1.bf16.msra.mxu0 0
    %1442 = vmatprep.mubr.bf16.mxu0 0
    %1443 = vmatmul.mubr.bf16.gmra.mrb[0].mxu0 %v1409
    %v1444 = vpop.f32.mrb[0].mxu0
    %v1445 = vadd.f32 0.0, %v1444
    %v1446 = vpop.f32.mrb[0].mxu0
    %v1447 = vadd.f32 0.0, %v1446
    %v1448 = vpop.f32.mrb[0].mxu0
    %v1449 = vpop.f32.mrb[0].mxu0
    %1450 = vdwg.mxu0
    %1451 = vmatprep.subr.bf16.mxu0 0
    %1452 = vmatpush1.bf16.msra.mxu0 %v728
    %1453 = vmatprep.subr.bf16.mxu0 0
    %1454 = vmatpush1.bf16.msra.mxu0 %v731
    %1455 = vmatprep.subr.bf16.mxu0 0
    %1456 = vmatpush1.bf16.msra.mxu0 %v734
    %1457 = vmatprep.subr.bf16.mxu0 0
    %1458 = vmatpush1.bf16.msra.mxu0 %v737
    %1459 = vmatprep.subr.bf16.mxu0 0
    %1460 = vmatpush1.bf16.msra.mxu0 %v740
    %1461 = vmatprep.subr.bf16.mxu0 0
    %1462 = vmatpush1.bf16.msra.mxu0 %v743
    %1463 = vmatprep.subr.bf16.mxu0 0
    %1464 = vmatpush1.bf16.msra.mxu0 %v746
    %1465 = vmatprep.subr.bf16.mxu0 0
    %1466 = vmatpush1.bf16.msra.mxu0 %v749
    %1467 = vmatprep.subr.bf16.mxu0 0
    %1468 = vmatpush1.bf16.msra.mxu0 0
    %1469 = vmatprep.subr.bf16.mxu0 0
    %1470 = vmatpush1.bf16.msra.mxu0 0
    %1471 = vmatprep.subr.bf16.mxu0 0
    %1472 = vmatpush1.bf16.msra.mxu0 0
    %1473 = vmatprep.subr.bf16.mxu0 0
    %1474 = vmatpush1.bf16.msra.mxu0 0
    %1475 = vmatprep.subr.bf16.mxu0 0
    %1476 = vmatpush1.bf16.msra.mxu0 0
    %1477 = vmatprep.subr.bf16.mxu0 0
    %1478 = vmatpush1.bf16.msra.mxu0 0
    %1479 = vmatprep.subr.bf16.mxu0 0
    %1480 = vmatpush1.bf16.msra.mxu0 0
    %1481 = vmatprep.subr.bf16.mxu0 0
    %1482 = vmatpush1.bf16.msra.mxu0 0
    %1483 = vmatprep.mubr.bf16.mxu0 0
    %1484 = vmatmul.mubr.bf16.gmra.mrb[0].mxu0 %v1409
    %v1485 = vpop.f32.mrb[0].mxu0
    %v1486 = vadd.f32 0.0, %v1485
    %v1487 = vpop.f32.mrb[0].mxu0
    %v1488 = vpop.f32.mrb[0].mxu0
    %v1489 = vpop.f32.mrb[0].mxu0
    %1490 = vdwg.mxu0
    %v1493 = vcombine.low %v1445, %v1447
    %v1495 = vadd.f32 %v1407, %v1493
    %v1496 = vmul.f32 %v1495, 0.5
    %v1497 = vtanh.pop %v1496
    %v1498 = vmul.f32 %v1497, 0.5
    %v1499 = vadd.f32 %v1498, 0.5
    %v1500 = vadd.f32 %v1486, %v868
    %v1501 = vmul.f32 %v1499, %v1500
    %v1502 = vadd.f32 %v1408, %v1501
    %v1503 = vtanh.pop %v1502
    %v1504 = vsub.f32 %v1404, %v1503
    %v1506 = vrot.slane %v1499, 4
    %v1508 = vmul.f32 %v1506, %v1504
    %v1509 = vadd.f32 %v1503, %v1508
    %s1510 = scalar_lea.vmem [#allocation2], 42
    %v1511 = vld [vmem:[%s1510] sm:$0x3f]
    %v1512 = vunpack.c.l.bf16 %v1511
    %v1513 = vunpack.c.h.bf16 %v1511
    %v1514 = vpack.c.bf16 %v1509, %v1509
    %1515 = vmatprep.subr.bf16.mxu0 %v727
    %1516 = vmatpush1.bf16.msra.mxu0 %v726
    %1517 = vmatprep.subr.bf16.mxu0 %v730
    %1518 = vmatpush1.bf16.msra.mxu0 %v729
    %1519 = vmatprep.subr.bf16.mxu0 %v733
    %1520 = vmatpush1.bf16.msra.mxu0 %v732
    %1521 = vmatprep.subr.bf16.mxu0 %v736
    %1522 = vmatpush1.bf16.msra.mxu0 %v735
    %1523 = vmatprep.subr.bf16.mxu0 %v739
    %1524 = vmatpush1.bf16.msra.mxu0 %v738
    %1525 = vmatprep.subr.bf16.mxu0 %v742
    %1526 = vmatpush1.bf16.msra.mxu0 %v741
    %1527 = vmatprep.subr.bf16.mxu0 %v745
    %1528 = vmatpush1.bf16.msra.mxu0 %v744
    %1529 = vmatprep.subr.bf16.mxu0 %v748
    %1530 = vmatpush1.bf16.msra.mxu0 %v747
    %1531 = vmatprep.subr.bf16.mxu0 0
    %1532 = vmatpush1.bf16.msra.mxu0 0
    %1533 = vmatprep.subr.bf16.mxu0 0
    %1534 = vmatpush1.bf16.msra.mxu0 0
    %1535 = vmatprep.subr.bf16.mxu0 0
    %1536 = vmatpush1.bf16.msra.mxu0 0
    %1537 = vmatprep.subr.bf16.mxu0 0
    %1538 = vmatpush1.bf16.msra.mxu0 0
    %1539 = vmatprep.subr.bf16.mxu0 0
    %1540 = vmatpush1.bf16.msra.mxu0 0
    %1541 = vmatprep.subr.bf16.mxu0 0
    %1542 = vmatpush1.bf16.msra.mxu0 0
    %1543 = vmatprep.subr.bf16.mxu0 0
    %1544 = vmatpush1.bf16.msra.mxu0 0
    %1545 = vmatprep.subr.bf16.mxu0 0
    %1546 = vmatpush1.bf16.msra.mxu0 0
    %1547 = vmatprep.mubr.bf16.mxu0 0
    %1548 = vmatmul.mubr.bf16.gmra.mrb[0].mxu0 %v1514
    %v1549 = vpop.f32.mrb[0].mxu0
    %v1550 = vadd.f32 0.0, %v1549
    %v1551 = vpop.f32.mrb[0].mxu0
    %v1552 = vadd.f32 0.0, %v1551
    %v1553 = vpop.f32.mrb[0].mxu0
    %v1554 = vpop.f32.mrb[0].mxu0
    %1555 = vdwg.mxu0
    %1556 = vmatprep.subr.bf16.mxu0 0
    %1557 = vmatpush1.bf16.msra.mxu0 %v728
    %1558 = vmatprep.subr.bf16.mxu0 0
    %1559 = vmatpush1.bf16.msra.mxu0 %v731
    %1560 = vmatprep.subr.bf16.mxu0 0
    %1561 = vmatpush1.bf16.msra.mxu0 %v734
    %1562 = vmatprep.subr.bf16.mxu0 0
    %1563 = vmatpush1.bf16.msra.mxu0 %v737
    %1564 = vmatprep.subr.bf16.mxu0 0
    %1565 = vmatpush1.bf16.msra.mxu0 %v740
    %1566 = vmatprep.subr.bf16.mxu0 0
    %1567 = vmatpush1.bf16.msra.mxu0 %v743
    %1568 = vmatprep.subr.bf16.mxu0 0
    %1569 = vmatpush1.bf16.msra.mxu0 %v746
    %1570 = vmatprep.subr.bf16.mxu0 0
    %1571 = vmatpush1.bf16.msra.mxu0 %v749
    %1572 = vmatprep.subr.bf16.mxu0 0
    %1573 = vmatpush1.bf16.msra.mxu0 0
    %1574 = vmatprep.subr.bf16.mxu0 0
    %1575 = vmatpush1.bf16.msra.mxu0 0
    %1576 = vmatprep.subr.bf16.mxu0 0
    %1577 = vmatpush1.bf16.msra.mxu0 0
    %1578 = vmatprep.subr.bf16.mxu0 0
    %1579 = vmatpush1.bf16.msra.mxu0 0
    %1580 = vmatprep.subr.bf16.mxu0 0
    %1581 = vmatpush1.bf16.msra.mxu0 0
    %1582 = vmatprep.subr.bf16.mxu0 0
    %1583 = vmatpush1.bf16.msra.mxu0 0
    %1584 = vmatprep.subr.bf16.mxu0 0
    %1585 = vmatpush1.bf16.msra.mxu0 0
    %1586 = vmatprep.subr.bf16.mxu0 0
    %1587 = vmatpush1.bf16.msra.mxu0 0
    %1588 = vmatprep.mubr.bf16.mxu0 0
    %1589 = vmatmul.mubr.bf16.gmra.mrb[0].mxu0 %v1514
    %v1590 = vpop.f32.mrb[0].mxu0
    %v1591 = vadd.f32 0.0, %v1590
    %v1592 = vpop.f32.mrb[0].mxu0
    %v1593 = vpop.f32.mrb[0].mxu0
    %v1594 = vpop.f32.mrb[0].mxu0
    %1595 = vdwg.mxu0
    %v1598 = vcombine.low %v1550, %v1552
    %v1600 = vadd.f32 %v1512, %v1598
    %v1601 = vmul.f32 %v1600, 0.5
    %v1602 = vtanh.pop %v1601
    %v1603 = vmul.f32 %v1602, 0.5
    %v1604 = vadd.f32 %v1603, 0.5
    %v1605 = vadd.f32 %v1591, %v868
    %v1606 = vmul.f32 %v1604, %v1605
    %v1607 = vadd.f32 %v1513, %v1606
    %v1608 = vtanh.pop %v1607
    %v1609 = vsub.f32 %v1509, %v1608
    %v1611 = vrot.slane %v1604, 4
    %v1613 = vmul.f32 %v1611, %v1609
    %v1614 = vadd.f32 %v1608, %v1613
    %v1616 = vrot.slane %v1614, 6
    %v1617 = vrot.slane %v1616, 4
    %v1619 = vmul.f32 %v1614, %v1617
    %v1620 = vsub.f32 %v1614, %v1617
    %v1621 = vand.u32 2147483647, %v1620
    %v1622 = vld [vmem:[#allocation9] sm:$0xf]
    %v1623 = vld [vmem:[#allocation9 + $0x4] sm:$0xf]
    %v1624 = vld [vmem:[#allocation9 + $0x8] sm:$0xf]
    %v1625 = vld [vmem:[#allocation9 + $0xc] sm:$0xf]
    %v1626 = vld [vmem:[#allocation9 + $0x10] sm:$0xf]
    %v1627 = vld [vmem:[#allocation9 + $0x14] sm:$0xf]
    %v1628 = vld [vmem:[#allocation9 + $0x18] sm:$0xf]
    %v1629 = vld [vmem:[#allocation9 + $0x1c] sm:$0xf]
    %v1630 = vld [vmem:[#allocation9 + $0x20] sm:$0xf]
    %v1631 = vld [vmem:[#allocation9 + $0x24] sm:$0xf]
    %v1632 = vld [vmem:[#allocation9 + $0x28] sm:$0xf]
    %v1633 = vld [vmem:[#allocation9 + $0x2c] sm:$0xf]
    %v1634 = vld [vmem:[#allocation9 + $0x30] sm:$0xf]
    %v1635 = vld [vmem:[#allocation9 + $0x34] sm:$0xf]
    %v1636 = vld [vmem:[#allocation9 + $0x38] sm:$0xf]
    %v1637 = vld [vmem:[#allocation9 + $0x3c] sm:$0xf]
    %v1638 = vld [vmem:[#allocation9 + $0x40] sm:$0xf]
    %v1639 = vld [vmem:[#allocation9 + $0x44] sm:$0xf]
    %v1640 = vld [vmem:[#allocation9 + $0x48] sm:$0xf]
    %v1641 = vld [vmem:[#allocation9 + $0x4c] sm:$0xf]
    %v1642 = vld [vmem:[#allocation9 + $0x50] sm:$0xf]
    %v1643 = vld [vmem:[#allocation9 + $0x54] sm:$0xf]
    %v1644 = vld [vmem:[#allocation9 + $0x58] sm:$0xf]
    %v1645 = vld [vmem:[#allocation9 + $0x5c] sm:$0xf]
    %v1646 = vld [vmem:[#allocation9 + $0x60] sm:$0xf]
    %v1647 = vld [vmem:[#allocation9 + $0x64] sm:$0xf]
    %v1648 = vld [vmem:[#allocation9 + $0x68] sm:$0xf]
    %v1649 = vld [vmem:[#allocation9 + $0x6c] sm:$0xf]
    %v1650 = vld [vmem:[#allocation9 + $0x70] sm:$0xf]
    %v1651 = vld [vmem:[#allocation9 + $0x74] sm:$0xf]
    %v1652 = vld [vmem:[#allocation9 + $0x78] sm:$0xf]
    %v1653 = vld [vmem:[#allocation9 + $0x7c] sm:$0xf]
    %v1654 = vpack.c.bf16 %v1619, %v1619
    %v1655 = vpack.c.bf16 %v1621, %v1621
    %v1672 = vunpack.c.l.b16 %v1638
    %v1673 = vunpack.c.l.b16 %v1639
    %v1674 = vunpack.c.l.b16 %v1640
    %v1675 = vunpack.c.l.b16 %v1641
    %v1676 = vunpack.c.l.b16 %v1642
    %v1677 = vunpack.c.l.b16 %v1643
    %v1678 = vunpack.c.l.b16 %v1644
    %v1679 = vunpack.c.l.b16 %v1645
    %v1680 = vunpack.c.l.b16 %v1646
    %v1681 = vunpack.c.l.b16 %v1647
    %v1682 = vunpack.c.l.b16 %v1648
    %v1683 = vunpack.c.l.b16 %v1649
    %v1684 = vunpack.c.l.b16 %v1650
    %v1685 = vunpack.c.l.b16 %v1651
    %v1686 = vunpack.c.l.b16 %v1652
    %v1687 = vunpack.c.l.b16 %v1653
    %v1688 = vpack.c.b16 %v1673, %v1672
    %v1689 = vpack.c.b16 %v1675, %v1674
    %v1690 = vpack.c.b16 %v1677, %v1676
    %v1691 = vpack.c.b16 %v1679, %v1678
    %v1692 = vpack.c.b16 %v1681, %v1680
    %v1693 = vpack.c.b16 %v1683, %v1682
    %v1694 = vpack.c.b16 %v1685, %v1684
    %v1695 = vpack.c.b16 %v1687, %v1686
    %1704 = vmatprep.subr.bf16.mxu0 0
    %1705 = vmatpush1.bf16.msra.mxu0 %v1688
    %1706 = vmatprep.subr.bf16.mxu0 0
    %1707 = vmatpush1.bf16.msra.mxu0 %v1689
    %1708 = vmatprep.subr.bf16.mxu0 0
    %1709 = vmatpush1.bf16.msra.mxu0 %v1690
    %1710 = vmatprep.subr.bf16.mxu0 0
    %1711 = vmatpush1.bf16.msra.mxu0 %v1691
    %1712 = vmatprep.subr.bf16.mxu0 0
    %1713 = vmatpush1.bf16.msra.mxu0 %v1692
    %1714 = vmatprep.subr.bf16.mxu0 0
    %1715 = vmatpush1.bf16.msra.mxu0 %v1693
    %1716 = vmatprep.subr.bf16.mxu0 0
    %1717 = vmatpush1.bf16.msra.mxu0 %v1694
    %1718 = vmatprep.subr.bf16.mxu0 0
    %1719 = vmatpush1.bf16.msra.mxu0 %v1695
    %1720 = vmatprep.subr.bf16.mxu0 0
    %1721 = vmatpush1.bf16.msra.mxu0 0
    %1722 = vmatprep.subr.bf16.mxu0 0
    %1723 = vmatpush1.bf16.msra.mxu0 0
    %1724 = vmatprep.subr.bf16.mxu0 0
    %1725 = vmatpush1.bf16.msra.mxu0 0
    %1726 = vmatprep.subr.bf16.mxu0 0
    %1727 = vmatpush1.bf16.msra.mxu0 0
    %1728 = vmatprep.subr.bf16.mxu0 0
    %1729 = vmatpush1.bf16.msra.mxu0 0
    %1730 = vmatprep.subr.bf16.mxu0 0
    %1731 = vmatpush1.bf16.msra.mxu0 0
    %1732 = vmatprep.subr.bf16.mxu0 0
    %1733 = vmatpush1.bf16.msra.mxu0 0
    %1734 = vmatprep.subr.bf16.mxu0 0
    %1735 = vmatpush1.bf16.msra.mxu0 0
    %1736 = vmatprep.mubr.bf16.mxu0 0
    %1737 = vmatmul.mubr.bf16.gmra.mrb[0].mxu0 %v1655
    %v1738 = vpop.f32.mrb[0].mxu0
    %v1739 = vadd.f32 0.0, %v1738
    %v1740 = vpop.f32.mrb[0].mxu0
    %v1741 = vpop.f32.mrb[0].mxu0
    %v1742 = vpop.f32.mrb[0].mxu0
    %1743 = vdwg.mxu0
    %v1760 = vunpack.c.l.b16 %v1622
    %v1761 = vunpack.c.l.b16 %v1623
    %v1762 = vunpack.c.l.b16 %v1624
    %v1763 = vunpack.c.l.b16 %v1625
    %v1764 = vunpack.c.l.b16 %v1626
    %v1765 = vunpack.c.l.b16 %v1627
    %v1766 = vunpack.c.l.b16 %v1628
    %v1767 = vunpack.c.l.b16 %v1629
    %v1768 = vunpack.c.l.b16 %v1630
    %v1769 = vunpack.c.l.b16 %v1631
    %v1770 = vunpack.c.l.b16 %v1632
    %v1771 = vunpack.c.l.b16 %v1633
    %v1772 = vunpack.c.l.b16 %v1634
    %v1773 = vunpack.c.l.b16 %v1635
    %v1774 = vunpack.c.l.b16 %v1636
    %v1775 = vunpack.c.l.b16 %v1637
    %v1776 = vpack.c.b16 %v1761, %v1760
    %v1777 = vpack.c.b16 %v1763, %v1762
    %v1778 = vpack.c.b16 %v1765, %v1764
    %v1779 = vpack.c.b16 %v1767, %v1766
    %v1780 = vpack.c.b16 %v1769, %v1768
    %v1781 = vpack.c.b16 %v1771, %v1770
    %v1782 = vpack.c.b16 %v1773, %v1772
    %v1783 = vpack.c.b16 %v1775, %v1774
    %1792 = vmatprep.subr.bf16.mxu0 0
    %1793 = vmatpush1.bf16.msra.mxu0 %v1776
    %1794 = vmatprep.subr.bf16.mxu0 0
    %1795 = vmatpush1.bf16.msra.mxu0 %v1777
    %1796 = vmatprep.subr.bf16.mxu0 0
    %1797 = vmatpush1.bf16.msra.mxu0 %v1778
    %1798 = vmatprep.subr.bf16.mxu0 0
    %1799 = vmatpush1.bf16.msra.mxu0 %v1779
    %1800 = vmatprep.subr.bf16.mxu0 0
    %1801 = vmatpush1.bf16.msra.mxu0 %v1780
    %1802 = vmatprep.subr.bf16.mxu0 0
    %1803 = vmatpush1.bf16.msra.mxu0 %v1781
    %1804 = vmatprep.subr.bf16.mxu0 0
    %1805 = vmatpush1.bf16.msra.mxu0 %v1782
    %1806 = vmatprep.subr.bf16.mxu0 0
    %1807 = vmatpush1.bf16.msra.mxu0 %v1783
    %1808 = vmatprep.subr.bf16.mxu0 0
    %1809 = vmatpush1.bf16.msra.mxu0 0
    %1810 = vmatprep.subr.bf16.mxu0 0
    %1811 = vmatpush1.bf16.msra.mxu0 0
    %1812 = vmatprep.subr.bf16.mxu0 0
    %1813 = vmatpush1.bf16.msra.mxu0 0
    %1814 = vmatprep.subr.bf16.mxu0 0
    %1815 = vmatpush1.bf16.msra.mxu0 0
    %1816 = vmatprep.subr.bf16.mxu0 0
    %1817 = vmatpush1.bf16.msra.mxu0 0
    %1818 = vmatprep.subr.bf16.mxu0 0
    %1819 = vmatpush1.bf16.msra.mxu0 0
    %1820 = vmatprep.subr.bf16.mxu0 0
    %1821 = vmatpush1.bf16.msra.mxu0 0
    %1822 = vmatprep.subr.bf16.mxu0 0
    %1823 = vmatpush1.bf16.msra.mxu0 0
    %1824 = vmatprep.mubr.bf16.mxu0 0
    %1825 = vmatmul.mubr.bf16.gmra.mrb[0].mxu0 %v1654
    %v1826 = vpop.f32.mrb[0].mxu0
    %v1827 = vadd.f32 %v1739, %v1826
    %v1828 = vpop.f32.mrb[0].mxu0
    %v1829 = vpop.f32.mrb[0].mxu0
    %v1830 = vpop.f32.mrb[0].mxu0
    %1831 = vdwg.mxu0
    %v1832 = vld [vmem:[%s6] sm:$0x1]
    %v1834 = vlaneseq
    %v1835 = vshrl.u32 %v1834, 7
    %v1836 = vsub.s32 0, %v1835
    %v1837 = vrot.slane %v1832, %v1836
    %v1839 = vadd.f32 %v1827, %v1837
    %v1840 = vmul.f32 %v1839, 0.5
    %v1841 = vtanh.pop %v1840
    %v1842 = vmul.f32 %v1841, 0.5
    %v1843 = vadd.f32 %v1842, 0.5
    %v1844 = vld [vmem:[%s7] sm:$0x1]
    %v1846 = vlaneseq
    %v1847 = vshrl.u32 %v1846, 7
    %v1848 = vsub.s32 0, %v1847
    %v1849 = vrot.slane %v1844, %v1848
    %v1851 = vmul.f32 %v1843, %v1849
    %vm1852 = vcmask 1041408
    %v1853 = vsel %vm1852, %v1851, 0.0
    %1854 = vadd.xlane.f32.xlu0 %v1853
    %v1855 = vpop.xlane.xlu0 %1854
    %v1856 = vld [vmem:[#allocation3] sm:$0x1]
    %v1858 = vlaneseq
    %v1859 = vshrl.u32 %v1858, 7
    %v1860 = vsub.s32 0, %v1859
    %v1861 = vrot.slane %v1856, %v1860
    %v1863 = vadd.f32 %v1855, %v1861
    %v1864 = vmul.f32 %v1863, 0.5
    %v1865 = vtanh.pop %v1864
    %v1866 = vmul.f32 %v1865, 0.5
    %v1867 = vadd.f32 %v1866, 0.5
    %vm1868 = vcmask 1024
    %1869 = vst.msk [vmem:[%s9] sm:$0x3] %vm1868, %v1867
    // Predicated region
    $region54: #{tpu_custom_call.1} parent=1 // pred_check
      _
    $region55: #{tpu_custom_call.1} parent=1 // pred_check_branch
      %1871 = sbr.rel (0) target = $region57
    $region56: #{tpu_custom_call.1} parent=1 // pred_region
      _
    $region57: #{tpu_custom_call.1} parent=1 // pred_fallthru
      _
    // Predicated region
    $region58: #{tpu_custom_call.1} parent=1 // pred_check
      _
    $region59: #{tpu_custom_call.1} parent=1 // pred_check_branch
      %1873 = sbr.rel (0) target = $region61
    $region60: #{tpu_custom_call.1} parent=1 // pred_region
      _
    $region61: #{tpu_custom_call.1} parent=1 // pred_fallthru
      _
    %1874 = vsyncpa [#allocation5], 1
    %1875 = vsyncpa [#allocation7], 1
    %1876 = vsyncpa [#allocation10], 1

</llo_original>
